<compile_context>
chip_gen: v7x
topology: tpu7x:2x2x1
jax: 0.10.0
libtpu: 0.0.40
codegen_flags: <defaults>
</compile_context>

<pallas_src>
import jax
import jax.numpy as jnp
from jax.experimental import pallas as pl
from jax.experimental.pallas import tpu as pltpu

EPS = 1e-5
NEG_SLOPE = 0.2
CHANNELS = [3, 64, 128, 256, 512, 1024]
MAX_WEIGHT_BLOCK_BYTES = 4 * 1024 * 1024   # bf16 weight tile cap (x2 buffers)


# ---------------------------------------------------------------------------
# Fused conv-block kernel: patches @ W (single K block) + bias -> LeakyReLU
# -> BatchNorm2d (training-mode batch statistics, biased variance).
# p_ref rows: 0 = conv bias, 1 = BN gamma, 2 = BN beta (rows 3..7 = padding).
# ---------------------------------------------------------------------------
def _conv_block_kernel(a_ref, w_ref, p_ref, o_ref):
    y = jnp.dot(a_ref[...], w_ref[...], preferred_element_type=jnp.float32)
    p = p_ref[...]
    y = y + p[0:1, :]                                    # conv bias
    y = jnp.where(y > 0, y, NEG_SLOPE * y)               # LeakyReLU(0.2)
    inv_m = 1.0 / y.shape[0]
    mu = jnp.sum(y, axis=0, keepdims=True) * inv_m       # BN batch mean
    ex2 = jnp.sum(y * y, axis=0, keepdims=True) * inv_m  # E[y^2]
    var = jnp.maximum(ex2 - mu * mu, 0.0)                # biased variance
    scale = p[1:2, :] * jax.lax.rsqrt(var + EPS)         # gamma / sqrt(var+eps)
    shift = p[2:3, :] - mu * scale                       # beta - mu*scale
    o_ref[...] = (y * scale + shift).astype(o_ref.dtype)


def _pick_tn(K, Cout):
    """Largest Cout tile (multiple of 128, or full Cout) whose bf16 weight
    block stays under MAX_WEIGHT_BLOCK_BYTES."""
    if K * Cout * 2 <= MAX_WEIGHT_BLOCK_BYTES:
        return Cout
    tn = max((MAX_WEIGHT_BLOCK_BYTES // (K * 2)) // 128 * 128, 128)
    while Cout % tn != 0:
        tn //= 2
    return tn


def conv_lrelu_bn(patches, w, pack):
    """patches: (M, K) bf16; w: (K, Cout) bf16; pack: (8, Cout) f32.
    Returns (M, Cout) bf16."""
    M, K = patches.shape
    Cout = w.shape[1]
    tn = _pick_tn(K, Cout)
    grid = (Cout // tn,)
    return pl.pallas_call(
        _conv_block_kernel,
        out_shape=jax.ShapeDtypeStruct((M, Cout), jnp.bfloat16),
        grid_spec=pltpu.PrefetchScalarGridSpec(
            num_scalar_prefetch=0,
            grid=grid,
            in_specs=[
                pl.BlockSpec((M, K), lambda j: (0, 0)),    # patches (grid-invariant)
                pl.BlockSpec((K, tn), lambda j: (0, j)),   # weight tile
                pl.BlockSpec((8, tn), lambda j: (0, j)),   # bias/gamma/beta slab
            ],
            out_specs=pl.BlockSpec((M, tn), lambda j: (0, j)),
        ),
        compiler_params=pltpu.CompilerParams(
            dimension_semantics=("parallel",),
            vmem_limit_bytes=32 * 1024 * 1024),
    )(patches, w, pack)


# ---------------------------------------------------------------------------
# Final Linear layer kernel (operands fit entirely in VMEM).
# ---------------------------------------------------------------------------
def _linear_kernel(x_ref, w_ref, b_ref, o_ref):
    o_ref[...] = (jnp.dot(x_ref[...], w_ref[...],
                          preferred_element_type=jnp.float32)
                  + b_ref[...]).astype(o_ref.dtype)


def linear(x, w, b):
    M = x.shape[0]
    N = w.shape[1]
    return pl.pallas_call(
        _linear_kernel,
        out_shape=jax.ShapeDtypeStruct((M, N), jnp.float32),
    )(x, w, b.reshape(1, N))


# ---------------------------------------------------------------------------
# im2col (pure reshuffle in XLA) — emits bf16 patches for the MXU.
# ---------------------------------------------------------------------------
def im2col(x, kh=4, kw=4, stride=2, pad=1):
    """x: NHWC (bf16) -> patches (N*OH*OW, kh*kw*C) bf16."""
    N, H, W, C = x.shape
    xp = jnp.pad(x, ((0, 0), (pad, pad), (pad, pad), (0, 0)))
    OH = (H + 2 * pad - kh) // stride + 1
    OW = (W + 2 * pad - kw) // stride + 1
    cols = []
    for i in range(kh):
        for j in range(kw):
            cols.append(xp[:, i:i + stride * OH:stride,
                           j:j + stride * OW:stride, :])
    p = jnp.stack(cols, axis=3)                      # (N, OH, OW, kh*kw, C)
    patches = p.reshape(N * OH * OW, kh * kw * C).astype(jnp.bfloat16)
    return patches, (N, OH, OW)


# ---------------------------------------------------------------------------
# Deterministic parameter init (shapes dictated by the module's __init__).
# ---------------------------------------------------------------------------
def init_params(key, latent_dim, in_hw):
    params = {"conv": []}
    h = in_hw
    for cin, cout in zip(CHANNELS[:-1], CHANNELS[1:]):
        key, k1, k2 = jax.random.split(key, 3)
        w = (jax.random.normal(k1, (4 * 4 * cin, cout), jnp.float32)
             * 0.05).astype(jnp.bfloat16)
        bias = jax.random.normal(k2, (cout,), jnp.float32) * 0.05
        pack = jnp.zeros((8, cout), jnp.float32)
        pack = pack.at[0].set(bias)    # conv bias
        pack = pack.at[1].set(1.0)     # BN weight (gamma) default
        # row 2 (BN bias / beta) stays zero; rows 3..7 are sublane padding.
        params["conv"].append((w, pack))
        h //= 2
    feat = CHANNELS[-1] * h * h
    key, k1, k2 = jax.random.split(key, 3)
    params["fc_w"] = (jax.random.normal(k1, (feat, latent_dim), jnp.float32)
                      * 0.02).astype(jnp.bfloat16)
    params["fc_b"] = jax.random.normal(k2, (latent_dim,), jnp.float32) * 0.02
    return params


# ---------------------------------------------------------------------------
# Full forward pass (matches Encoder.forward semantics).
# ---------------------------------------------------------------------------
def encoder_forward(params, x_nchw):
    x = jnp.transpose(x_nchw, (0, 2, 3, 1)).astype(jnp.bfloat16)  # NCHW->NHWC
    for (w, pack) in params["conv"]:
        patches, (n, oh, ow) = im2col(x)
        y = conv_lrelu_bn(patches, w, pack)
        x = y.reshape(n, oh, ow, w.shape[1])
    x_nchw_out = jnp.transpose(x, (0, 3, 1, 2))       # back to NCHW layout
    shape = x_nchw_out.shape                          # (N, 1024, H/32, W/32)
    flat = x_nchw_out.reshape(shape[0], -1)           # nn.Flatten(1)
    size = flat.shape[1]                              # util.numel per sample
    mean = linear(flat, params["fc_w"], params["fc_b"])
    variance = mean      # the reference applies the SAME self.fc twice
    return mean, variance, size, shape


if __name__ == "__main__":
    LATENT_DIM = 256
    N, C, H, W = 2, 3, 32, 32   # 32 is the smallest spatial size surviving
                                # five stride-2 4x4 convs (ends at 1x1).
    key = jax.random.PRNGKey(0)
    key, kx = jax.random.split(key)
    x = jax.random.normal(kx, (N, C, H, W), jnp.float32)

    params = init_params(key, LATENT_DIM, H)

    mean, variance, size, shape = encoder_forward(params, x)
    jax.block_until_ready((mean, variance))

    assert mean.shape == (N, LATENT_DIM)
    assert variance.shape == (N, LATENT_DIM)
    assert shape == (N, 1024, H // 32, W // 32)
    assert size == 1024 * (H // 32) * (W // 32)
    assert bool(jnp.allclose(mean, variance))  # same fc applied twice
    assert bool(jnp.all(jnp.isfinite(mean)))
    print("KERNEL_OK")
</pallas_src>

<mosaic_0001>
module attributes {stable_mosaic.version = 11 : i64} {
  func.func @_conv_block_kernel(%arg0: i32, %arg1: memref<512x48xbf16, #tpu.memory_space<vmem>>, %arg2: memref<48x64xbf16, #tpu.memory_space<vmem>>, %arg3: memref<8x64xf32, #tpu.memory_space<vmem>>, %arg4: memref<512x64xbf16, #tpu.memory_space<vmem>>) attributes {dimension_semantics = [#tpu.dimension_semantics<parallel>], iteration_bounds = array<i64: 1>, scalar_prefetch = 0 : i64, scratch_operands = 0 : i64, tpu.core_type = #tpu.core_type<tc>, window_params = [{pipeline_mode = #tpu.pipeline_mode<synchronous>, transform_indices = @transform_0, window_bounds = array<i64: 512, 48>}, {transform_indices = @transform_1, window_bounds = array<i64: 48, 64>}, {transform_indices = @transform_2, window_bounds = array<i64: 8, 64>}, {transform_indices = @transform_3, window_bounds = array<i64: 512, 64>}]} {
    %c0 = arith.constant 0 : index
    %c0_0 = arith.constant 0 : index
    %0 = vector.load %arg1[%c0, %c0_0] : memref<512x48xbf16, #tpu.memory_space<vmem>>, vector<512x48xbf16>
    %c0_1 = arith.constant 0 : index
    %c0_2 = arith.constant 0 : index
    %1 = vector.load %arg2[%c0_1, %c0_2] : memref<48x64xbf16, #tpu.memory_space<vmem>>, vector<48x64xbf16>
    %cst = arith.constant dense<0.000000e+00> : vector<512x64xf32>
    %2 = tpu.matmul %0, %1, %cst {dimension_numbers = #tpu.dot_dimension_numbers<[1], [0], [0], [1], [0, 0, 1, 1], [], []>} : vector<512x48xbf16>, vector<48x64xbf16>, vector<512x64xf32> -> vector<512x64xf32>
    %c0_3 = arith.constant 0 : index
    %c0_4 = arith.constant 0 : index
    %3 = vector.load %arg3[%c0_3, %c0_4] : memref<8x64xf32, #tpu.memory_space<vmem>>, vector<8x64xf32>
    %4 = vector.extract_strided_slice %3 {offsets = [0, 0], sizes = [1, 64], strides = [1, 1]} : vector<8x64xf32> to vector<1x64xf32>
    %5 = vector.broadcast %4 : vector<1x64xf32> to vector<512x64xf32>
    %6 = arith.addf %2, %5 : vector<512x64xf32>
    %cst_5 = arith.constant 0.000000e+00 : f32
    %7 = vector.broadcast %cst_5 : f32 to vector<512x64xf32>
    %8 = arith.cmpf ogt, %6, %7 : vector<512x64xf32>
    %cst_6 = arith.constant 2.000000e-01 : f32
    %9 = vector.broadcast %cst_6 : f32 to vector<512x64xf32>
    %10 = arith.mulf %9, %6 : vector<512x64xf32>
    %11 = arith.select %8, %6, %10 : vector<512x64xi1>, vector<512x64xf32>
    %cst_7 = arith.constant dense<0.000000e+00> : vector<64xf32>
    %12 = vector.multi_reduction <add>, %11, %cst_7 [0] : vector<512x64xf32> to vector<64xf32>
    %13 = vector.shape_cast %12 : vector<64xf32> to vector<1x64xf32>
    %cst_8 = arith.constant 0.001953125 : f32
    %14 = vector.broadcast %cst_8 : f32 to vector<1x64xf32>
    %15 = arith.mulf %13, %14 : vector<1x64xf32>
    %16 = arith.mulf %11, %11 : vector<512x64xf32>
    %cst_9 = arith.constant dense<0.000000e+00> : vector<64xf32>
    %17 = vector.multi_reduction <add>, %16, %cst_9 [0] : vector<512x64xf32> to vector<64xf32>
    %18 = vector.shape_cast %17 : vector<64xf32> to vector<1x64xf32>
    %cst_10 = arith.constant 0.001953125 : f32
    %19 = vector.broadcast %cst_10 : f32 to vector<1x64xf32>
    %20 = arith.mulf %18, %19 : vector<1x64xf32>
    %21 = arith.mulf %15, %15 : vector<1x64xf32>
    %22 = arith.subf %20, %21 : vector<1x64xf32>
    %cst_11 = arith.constant 0.000000e+00 : f32
    %23 = vector.broadcast %cst_11 : f32 to vector<1x64xf32>
    %24 = arith.maximumf %22, %23 : vector<1x64xf32>
    %25 = vector.extract_strided_slice %3 {offsets = [1, 0], sizes = [1, 64], strides = [1, 1]} : vector<8x64xf32> to vector<1x64xf32>
    %cst_12 = arith.constant 9.99999974E-6 : f32
    %26 = vector.broadcast %cst_12 : f32 to vector<1x64xf32>
    %27 = arith.addf %24, %26 : vector<1x64xf32>
    %28 = math.rsqrt %27 : vector<1x64xf32>
    %29 = arith.mulf %25, %28 : vector<1x64xf32>
    %30 = vector.extract_strided_slice %3 {offsets = [2, 0], sizes = [1, 64], strides = [1, 1]} : vector<8x64xf32> to vector<1x64xf32>
    %31 = arith.mulf %15, %29 : vector<1x64xf32>
    %32 = arith.subf %30, %31 : vector<1x64xf32>
    %33 = vector.broadcast %29 : vector<1x64xf32> to vector<512x64xf32>
    %34 = arith.mulf %11, %33 : vector<512x64xf32>
    %35 = vector.broadcast %32 : vector<1x64xf32> to vector<512x64xf32>
    %36 = arith.addf %34, %35 : vector<512x64xf32>
    %37 = arith.truncf %36 : vector<512x64xf32> to vector<512x64xbf16>
    %c0_13 = arith.constant 0 : index
    %c0_14 = arith.constant 0 : index
    %38 = vector.load %arg4[%c0_13, %c0_14] : memref<512x64xbf16, #tpu.memory_space<vmem>>, vector<512x64xbf16>
    tpu.vector_store %arg4[%c0_13, %c0_14], %37 {strides = array<i32>} : memref<512x64xbf16, #tpu.memory_space<vmem>>, vector<512x64xbf16>,
    return
  }
  func.func @transform_0(%arg0: i32) -> (i32, i32) {
    %c0_i32 = arith.constant 0 : i32
    %c0_i32_0 = arith.constant 0 : i32
    %c0_i32_1 = arith.constant 0 : i32
    return %c0_i32, %c0_i32_0 : i32, i32
  }
  func.func @transform_1(%arg0: i32) -> (i32, i32) {
    %c0_i32 = arith.constant 0 : i32
    %c0_i32_0 = arith.constant 0 : i32
    return %c0_i32, %arg0 : i32, i32
  }
  func.func @transform_2(%arg0: i32) -> (i32, i32) {
    %c0_i32 = arith.constant 0 : i32
    %c0_i32_0 = arith.constant 0 : i32
    return %c0_i32, %arg0 : i32, i32
  }
  func.func @transform_3(%arg0: i32) -> (i32, i32) {
    %c0_i32 = arith.constant 0 : i32
    %c0_i32_0 = arith.constant 0 : i32
    return %c0_i32, %arg0 : i32, i32
  }
}

</mosaic_0001>

<llo_original>
// kernel: tpu_custom_call.1
$region0: #{tpu_custom_call.1}
  #allocation0 [shape = 'u32[]', space=smem, size = 0x4, offset = 0x4, fixed_abs, tag = 'smem constant byte address 0x4 - core index']
  #allocation1 [shape = 'u32[144,128]{1,0:T(1,128)}', space=vmem, size = 0x12000, scoped, tag = 'internal scratch']
  %s0 = inlined_call_operand.vmem [shape: bf16[512,48], index: 0, kind: input, shape index: {}]
  %s1 = inlined_call_operand.vmem [shape: bf16[48,64], index: 1, kind: input, shape index: {}]
  %s2 = inlined_call_operand.vmem [shape: f32[8,64], index: 2, kind: input, shape index: {}]
  %s3 = inlined_call_operand.vmem [shape: bf16[512,64], index: 3, kind: output, shape index: {}]
  %s4 = sld [smem:[#allocation0]]
  $region22: #{tpu_custom_call.1} parent=0
    _
  %s6 = ssub.s32 1, %s4
  %s7 = scalar_select 0, %s6, %s4
  // Predicated region
  $region2: #{tpu_custom_call.1} parent=0 // pred_check
    _
  $region3: #{tpu_custom_call.1} parent=0 // pred_check_branch
    %9 = sbr.rel (0) target = $region5
  $region4: #{tpu_custom_call.1} parent=0 // pred_region
    _
  $region5: #{tpu_custom_call.1} parent=0 // pred_fallthru
    _
  // Predicated region
  $region6: #{tpu_custom_call.1} parent=0 // pred_check
    _
  $region7: #{tpu_custom_call.1} parent=0 // pred_check_branch
    %11 = sbr.rel (0) target = $region9
  $region8: #{tpu_custom_call.1} parent=0 // pred_region
    _
  $region9: #{tpu_custom_call.1} parent=0 // pred_fallthru
    _
  // Predicated region
  $region10: #{tpu_custom_call.1} parent=0 // pred_check
    _
  $region11: #{tpu_custom_call.1} parent=0 // pred_check_branch
    %13 = sbr.rel (0) target = $region13
  $region12: #{tpu_custom_call.1} parent=0 // pred_region
    _
  $region13: #{tpu_custom_call.1} parent=0 // pred_fallthru
    _
  %v15 = vld [vmem:[%s0] sm:$0xf]
  %v16 = vld [vmem:[%s0 + $0x4] sm:$0xf]
  %v17 = vld [vmem:[%s0 + $0x8] sm:$0xf]
  %v18 = vld [vmem:[%s0 + $0xc] sm:$0xf]
  %v19 = vld [vmem:[%s0 + $0x10] sm:$0xf]
  %v20 = vld [vmem:[%s0 + $0x14] sm:$0xf]
  %v21 = vld [vmem:[%s0 + $0x18] sm:$0xf]
  %v22 = vld [vmem:[%s0 + $0x1c] sm:$0xf]
  %v23 = vld [vmem:[%s0 + $0x20] sm:$0xf]
  %v24 = vld [vmem:[%s0 + $0x24] sm:$0xf]
  %v25 = vld [vmem:[%s0 + $0x28] sm:$0xf]
  %v26 = vld [vmem:[%s0 + $0x2c] sm:$0xf]
  %v27 = vld [vmem:[%s0 + $0x30] sm:$0xf]
  %v28 = vld [vmem:[%s0 + $0x34] sm:$0xf]
  %v29 = vld [vmem:[%s0 + $0x38] sm:$0xf]
  %v30 = vld [vmem:[%s0 + $0x3c] sm:$0xf]
  %v31 = vld [vmem:[%s0 + $0x40] sm:$0xf]
  %v32 = vld [vmem:[%s0 + $0x44] sm:$0xf]
  %v33 = vld [vmem:[%s0 + $0x48] sm:$0xf]
  %v34 = vld [vmem:[%s0 + $0x4c] sm:$0xf]
  %v35 = vld [vmem:[%s0 + $0x50] sm:$0xf]
  %v36 = vld [vmem:[%s0 + $0x54] sm:$0xf]
  %v37 = vld [vmem:[%s0 + $0x58] sm:$0xf]
  %v38 = vld [vmem:[%s0 + $0x5c] sm:$0xf]
  %v39 = vld [vmem:[%s0 + $0x60] sm:$0xf]
  %v40 = vld [vmem:[%s0 + $0x64] sm:$0xf]
  %v41 = vld [vmem:[%s0 + $0x68] sm:$0xf]
  %v42 = vld [vmem:[%s0 + $0x6c] sm:$0xf]
  %v43 = vld [vmem:[%s0 + $0x70] sm:$0xf]
  %v44 = vld [vmem:[%s0 + $0x74] sm:$0xf]
  %v45 = vld [vmem:[%s0 + $0x78] sm:$0xf]
  %v46 = vld [vmem:[%s0 + $0x7c] sm:$0xf]
  %v47 = vld [vmem:[%s0 + $0x80] sm:$0xf]
  %v48 = vld [vmem:[%s0 + $0x84] sm:$0xf]
  %v49 = vld [vmem:[%s0 + $0x88] sm:$0xf]
  %v50 = vld [vmem:[%s0 + $0x8c] sm:$0xf]
  %v51 = vld [vmem:[%s0 + $0x90] sm:$0xf]
  %v52 = vld [vmem:[%s0 + $0x94] sm:$0xf]
  %v53 = vld [vmem:[%s0 + $0x98] sm:$0xf]
  %v54 = vld [vmem:[%s0 + $0x9c] sm:$0xf]
  %v55 = vld [vmem:[%s0 + $0xa0] sm:$0xf]
  %v56 = vld [vmem:[%s0 + $0xa4] sm:$0xf]
  %v57 = vld [vmem:[%s0 + $0xa8] sm:$0xf]
  %v58 = vld [vmem:[%s0 + $0xac] sm:$0xf]
  %v59 = vld [vmem:[%s0 + $0xb0] sm:$0xf]
  %v60 = vld [vmem:[%s0 + $0xb4] sm:$0xf]
  %v61 = vld [vmem:[%s0 + $0xb8] sm:$0xf]
  %v62 = vld [vmem:[%s0 + $0xbc] sm:$0xf]
  %v63 = vld [vmem:[%s0 + $0xc0] sm:$0xf]
  %v64 = vld [vmem:[%s0 + $0xc4] sm:$0xf]
  %v65 = vld [vmem:[%s0 + $0xc8] sm:$0xf]
  %v66 = vld [vmem:[%s0 + $0xcc] sm:$0xf]
  %v67 = vld [vmem:[%s0 + $0xd0] sm:$0xf]
  %v68 = vld [vmem:[%s0 + $0xd4] sm:$0xf]
  %v69 = vld [vmem:[%s0 + $0xd8] sm:$0xf]
  %v70 = vld [vmem:[%s0 + $0xdc] sm:$0xf]
  %v71 = vld [vmem:[%s0 + $0xe0] sm:$0xf]
  %v72 = vld [vmem:[%s0 + $0xe4] sm:$0xf]
  %v73 = vld [vmem:[%s0 + $0xe8] sm:$0xf]
  %v74 = vld [vmem:[%s0 + $0xec] sm:$0xf]
  %v75 = vld [vmem:[%s0 + $0xf0] sm:$0xf]
  %v76 = vld [vmem:[%s0 + $0xf4] sm:$0xf]
  %v77 = vld [vmem:[%s0 + $0xf8] sm:$0xf]
  %v78 = vld [vmem:[%s0 + $0xfc] sm:$0xf]
  %v79 = vld [vmem:[%s1] sm:$0xf]
  %v80 = vld [vmem:[%s1 + $0x4] sm:$0xf]
  %v81 = vld [vmem:[%s1 + $0x8] sm:$0xf]
  %v82 = vld [vmem:[%s1 + $0xc] sm:$0xf]
  %v83 = vld [vmem:[%s1 + $0x10] sm:$0xf]
  %v84 = vld [vmem:[%s1 + $0x14] sm:$0xf]
  %v85 = vld [vmem:[%s2] sm:$0xff]
  %v86 = vlaneseq
  %v87 = vshrl.u32 %v86, 7
  %v88 = vsub.s32 0, %v87
  %v89 = vrot.slane %v85, %v88
  %v154 = vunpack.c.l.b16 %v15
  %v155 = vunpack.c.l.b16 %v16
  %v156 = vunpack.c.l.b16 %v17
  %v157 = vunpack.c.l.b16 %v18
  %v158 = vunpack.c.l.b16 %v19
  %v159 = vunpack.c.l.b16 %v20
  %v160 = vunpack.c.l.b16 %v21
  %v161 = vunpack.c.l.b16 %v22
  %v162 = vunpack.c.l.b16 %v23
  %v163 = vunpack.c.l.b16 %v24
  %v164 = vunpack.c.l.b16 %v25
  %v165 = vunpack.c.l.b16 %v26
  %v166 = vunpack.c.l.b16 %v27
  %v167 = vunpack.c.l.b16 %v28
  %v168 = vunpack.c.l.b16 %v29
  %v169 = vunpack.c.l.b16 %v30
  %v170 = vunpack.c.l.b16 %v31
  %v171 = vunpack.c.l.b16 %v32
  %v172 = vunpack.c.l.b16 %v33
  %v173 = vunpack.c.l.b16 %v34
  %v174 = vunpack.c.l.b16 %v35
  %v175 = vunpack.c.l.b16 %v36
  %v176 = vunpack.c.l.b16 %v37
  %v177 = vunpack.c.l.b16 %v38
  %v178 = vunpack.c.l.b16 %v39
  %v179 = vunpack.c.l.b16 %v40
  %v180 = vunpack.c.l.b16 %v41
  %v181 = vunpack.c.l.b16 %v42
  %v182 = vunpack.c.l.b16 %v43
  %v183 = vunpack.c.l.b16 %v44
  %v184 = vunpack.c.l.b16 %v45
  %v185 = vunpack.c.l.b16 %v46
  %v186 = vunpack.c.l.b16 %v47
  %v187 = vunpack.c.l.b16 %v48
  %v188 = vunpack.c.l.b16 %v49
  %v189 = vunpack.c.l.b16 %v50
  %v190 = vunpack.c.l.b16 %v51
  %v191 = vunpack.c.l.b16 %v52
  %v192 = vunpack.c.l.b16 %v53
  %v193 = vunpack.c.l.b16 %v54
  %v194 = vunpack.c.l.b16 %v55
  %v195 = vunpack.c.l.b16 %v56
  %v196 = vunpack.c.l.b16 %v57
  %v197 = vunpack.c.l.b16 %v58
  %v198 = vunpack.c.l.b16 %v59
  %v199 = vunpack.c.l.b16 %v60
  %v200 = vunpack.c.l.b16 %v61
  %v201 = vunpack.c.l.b16 %v62
  %v202 = vunpack.c.l.b16 %v63
  %v203 = vunpack.c.l.b16 %v64
  %v204 = vunpack.c.l.b16 %v65
  %v205 = vunpack.c.l.b16 %v66
  %v206 = vunpack.c.l.b16 %v67
  %v207 = vunpack.c.l.b16 %v68
  %v208 = vunpack.c.l.b16 %v69
  %v209 = vunpack.c.l.b16 %v70
  %v210 = vunpack.c.l.b16 %v71
  %v211 = vunpack.c.l.b16 %v72
  %v212 = vunpack.c.l.b16 %v73
  %v213 = vunpack.c.l.b16 %v74
  %v214 = vunpack.c.l.b16 %v75
  %v215 = vunpack.c.l.b16 %v76
  %v216 = vunpack.c.l.b16 %v77
  %v217 = vunpack.c.l.b16 %v78
  %v218 = vpack.c.b16 %v155, %v154
  %v219 = vpack.c.b16 %v157, %v156
  %v220 = vpack.c.b16 %v159, %v158
  %v221 = vpack.c.b16 %v161, %v160
  %v222 = vpack.c.b16 %v163, %v162
  %v223 = vpack.c.b16 %v165, %v164
  %v224 = vpack.c.b16 %v167, %v166
  %v225 = vpack.c.b16 %v169, %v168
  %v226 = vpack.c.b16 %v171, %v170
  %v227 = vpack.c.b16 %v173, %v172
  %v228 = vpack.c.b16 %v175, %v174
  %v229 = vpack.c.b16 %v177, %v176
  %v230 = vpack.c.b16 %v179, %v178
  %v231 = vpack.c.b16 %v181, %v180
  %v232 = vpack.c.b16 %v183, %v182
  %v233 = vpack.c.b16 %v185, %v184
  %v234 = vpack.c.b16 %v187, %v186
  %v235 = vpack.c.b16 %v189, %v188
  %v236 = vpack.c.b16 %v191, %v190
  %v237 = vpack.c.b16 %v193, %v192
  %v238 = vpack.c.b16 %v195, %v194
  %v239 = vpack.c.b16 %v197, %v196
  %v240 = vpack.c.b16 %v199, %v198
  %v241 = vpack.c.b16 %v201, %v200
  %v242 = vpack.c.b16 %v203, %v202
  %v243 = vpack.c.b16 %v205, %v204
  %v244 = vpack.c.b16 %v207, %v206
  %v245 = vpack.c.b16 %v209, %v208
  %v246 = vpack.c.b16 %v211, %v210
  %v247 = vpack.c.b16 %v213, %v212
  %v248 = vpack.c.b16 %v215, %v214
  %v249 = vpack.c.b16 %v217, %v216
  %v256 = vunpack.c.l.b16 %v79
  %v257 = vunpack.c.l.b16 %v80
  %v258 = vunpack.c.l.b16 %v81
  %v259 = vunpack.c.l.b16 %v82
  %v260 = vunpack.c.l.b16 %v83
  %v261 = vunpack.c.l.b16 %v84
  %v262 = vpack.c.b16 %v257, %v256
  %v263 = vpack.c.b16 %v259, %v258
  %v264 = vpack.c.b16 %v261, %v260
  %vm268 = vcmask 392192
  %v270 = vsel %vm268, %v218, 0
  %v273 = vsel %vm268, %v219, 0
  %v276 = vsel %vm268, %v220, 0
  %v279 = vsel %vm268, %v221, 0
  %v282 = vsel %vm268, %v222, 0
  %v285 = vsel %vm268, %v223, 0
  %v288 = vsel %vm268, %v224, 0
  %v291 = vsel %vm268, %v225, 0
  %v294 = vsel %vm268, %v226, 0
  %v297 = vsel %vm268, %v227, 0
  %v300 = vsel %vm268, %v228, 0
  %v303 = vsel %vm268, %v229, 0
  %v306 = vsel %vm268, %v230, 0
  %v309 = vsel %vm268, %v231, 0
  %v312 = vsel %vm268, %v232, 0
  %v315 = vsel %vm268, %v233, 0
  %v318 = vsel %vm268, %v234, 0
  %v321 = vsel %vm268, %v235, 0
  %v324 = vsel %vm268, %v236, 0
  %v327 = vsel %vm268, %v237, 0
  %v330 = vsel %vm268, %v238, 0
  %v333 = vsel %vm268, %v239, 0
  %v336 = vsel %vm268, %v240, 0
  %v339 = vsel %vm268, %v241, 0
  %v342 = vsel %vm268, %v242, 0
  %v345 = vsel %vm268, %v243, 0
  %v348 = vsel %vm268, %v244, 0
  %v351 = vsel %vm268, %v245, 0
  %v354 = vsel %vm268, %v246, 0
  %v357 = vsel %vm268, %v247, 0
  %v360 = vsel %vm268, %v248, 0
  %v363 = vsel %vm268, %v249, 0
  %365 = vmatprep.subr.bf16.mxu0 0
  %366 = vmatpush1.bf16.msra.mxu0 %v262
  %367 = vmatprep.subr.bf16.mxu0 0
  %368 = vmatpush1.bf16.msra.mxu0 %v263
  %369 = vmatprep.subr.bf16.mxu0 0
  %370 = vmatpush1.bf16.msra.mxu0 %v264
  %371 = vmatprep.subr.bf16.mxu0 0
  %372 = vmatpush1.bf16.msra.mxu0 0
  %373 = vmatprep.subr.bf16.mxu0 0
  %374 = vmatpush1.bf16.msra.mxu0 0
  %375 = vmatprep.subr.bf16.mxu0 0
  %376 = vmatpush1.bf16.msra.mxu0 0
  %377 = vmatprep.subr.bf16.mxu0 0
  %378 = vmatpush1.bf16.msra.mxu0 0
  %379 = vmatprep.subr.bf16.mxu0 0
  %380 = vmatpush1.bf16.msra.mxu0 0
  %381 = vmatprep.subr.bf16.mxu0 0
  %382 = vmatpush1.bf16.msra.mxu0 0
  %383 = vmatprep.subr.bf16.mxu0 0
  %384 = vmatpush1.bf16.msra.mxu0 0
  %385 = vmatprep.subr.bf16.mxu0 0
  %386 = vmatpush1.bf16.msra.mxu0 0
  %387 = vmatprep.subr.bf16.mxu0 0
  %388 = vmatpush1.bf16.msra.mxu0 0
  %389 = vmatprep.subr.bf16.mxu0 0
  %390 = vmatpush1.bf16.msra.mxu0 0
  %391 = vmatprep.subr.bf16.mxu0 0
  %392 = vmatpush1.bf16.msra.mxu0 0
  %393 = vmatprep.subr.bf16.mxu0 0
  %394 = vmatpush1.bf16.msra.mxu0 0
  %395 = vmatprep.subr.bf16.mxu0 0
  %396 = vmatpush1.bf16.msra.mxu0 0
  %397 = vmatprep.mubr.bf16.mxu0 0
  %398 = vmatmul.mubr.bf16.gmra.mrb[0].mxu0 %v270
  %v399 = vpop.f32.mrb[0].mxu0
  %v400 = vadd.f32 %v89, %v399
  %v401 = vpop.f32.mrb[0].mxu0
  %v402 = vpop.f32.mrb[0].mxu0
  %v403 = vadd.f32 %v89, %v402
  %v404 = vpop.f32.mrb[0].mxu0
  %405 = vmatprep.mubr.bf16.mxu0 0
  %406 = vmatmul.mubr.bf16.gmra.mrb[0].mxu0 %v273
  %v407 = vpop.f32.mrb[0].mxu0
  %v408 = vadd.f32 %v89, %v407
  %v409 = vpop.f32.mrb[0].mxu0
  %v410 = vpop.f32.mrb[0].mxu0
  %v411 = vadd.f32 %v89, %v410
  %v412 = vpop.f32.mrb[0].mxu0
  %413 = vmatprep.mubr.bf16.mxu0 0
  %414 = vmatmul.mubr.bf16.gmra.mrb[0].mxu0 %v276
  %v415 = vpop.f32.mrb[0].mxu0
  %v416 = vadd.f32 %v89, %v415
  %v417 = vpop.f32.mrb[0].mxu0
  %v418 = vpop.f32.mrb[0].mxu0
  %v419 = vadd.f32 %v89, %v418
  %v420 = vpop.f32.mrb[0].mxu0
  %421 = vmatprep.mubr.bf16.mxu0 0
  %422 = vmatmul.mubr.bf16.gmra.mrb[0].mxu0 %v279
  %v423 = vpop.f32.mrb[0].mxu0
  %v424 = vadd.f32 %v89, %v423
  %v425 = vpop.f32.mrb[0].mxu0
  %v426 = vpop.f32.mrb[0].mxu0
  %v427 = vadd.f32 %v89, %v426
  %v428 = vpop.f32.mrb[0].mxu0
  %429 = vmatprep.mubr.bf16.mxu0 0
  %430 = vmatmul.mubr.bf16.gmra.mrb[0].mxu0 %v282
  %v431 = vpop.f32.mrb[0].mxu0
  %v432 = vadd.f32 %v89, %v431
  %v433 = vpop.f32.mrb[0].mxu0
  %v434 = vpop.f32.mrb[0].mxu0
  %v435 = vadd.f32 %v89, %v434
  %v436 = vpop.f32.mrb[0].mxu0
  %437 = vmatprep.mubr.bf16.mxu0 0
  %438 = vmatmul.mubr.bf16.gmra.mrb[0].mxu0 %v285
  %v439 = vpop.f32.mrb[0].mxu0
  %v440 = vadd.f32 %v89, %v439
  %v441 = vpop.f32.mrb[0].mxu0
  %v442 = vpop.f32.mrb[0].mxu0
  %v443 = vadd.f32 %v89, %v442
  %v444 = vpop.f32.mrb[0].mxu0
  %445 = vmatprep.mubr.bf16.mxu0 0
  %446 = vmatmul.mubr.bf16.gmra.mrb[0].mxu0 %v288
  %v447 = vpop.f32.mrb[0].mxu0
  %v448 = vadd.f32 %v89, %v447
  %v449 = vpop.f32.mrb[0].mxu0
  %v450 = vpop.f32.mrb[0].mxu0
  %v451 = vadd.f32 %v89, %v450
  %v452 = vpop.f32.mrb[0].mxu0
  %453 = vmatprep.mubr.bf16.mxu0 0
  %454 = vmatmul.mubr.bf16.gmra.mrb[0].mxu0 %v291
  %v455 = vpop.f32.mrb[0].mxu0
  %v456 = vadd.f32 %v89, %v455
  %v457 = vpop.f32.mrb[0].mxu0
  %v458 = vpop.f32.mrb[0].mxu0
  %v459 = vadd.f32 %v89, %v458
  %v460 = vpop.f32.mrb[0].mxu0
  %461 = vmatprep.mubr.bf16.mxu0 0
  %462 = vmatmul.mubr.bf16.gmra.mrb[0].mxu0 %v294
  %v463 = vpop.f32.mrb[0].mxu0
  %v464 = vadd.f32 %v89, %v463
  %v465 = vpop.f32.mrb[0].mxu0
  %v466 = vpop.f32.mrb[0].mxu0
  %v467 = vadd.f32 %v89, %v466
  %v468 = vpop.f32.mrb[0].mxu0
  %469 = vmatprep.mubr.bf16.mxu0 0
  %470 = vmatmul.mubr.bf16.gmra.mrb[0].mxu0 %v297
  %v471 = vpop.f32.mrb[0].mxu0
  %v472 = vadd.f32 %v89, %v471
  %v473 = vpop.f32.mrb[0].mxu0
  %v474 = vpop.f32.mrb[0].mxu0
  %v475 = vadd.f32 %v89, %v474
  %v476 = vpop.f32.mrb[0].mxu0
  %477 = vmatprep.mubr.bf16.mxu0 0
  %478 = vmatmul.mubr.bf16.gmra.mrb[0].mxu0 %v300
  %v479 = vpop.f32.mrb[0].mxu0
  %v480 = vadd.f32 %v89, %v479
  %v481 = vpop.f32.mrb[0].mxu0
  %v482 = vpop.f32.mrb[0].mxu0
  %v483 = vadd.f32 %v89, %v482
  %v484 = vpop.f32.mrb[0].mxu0
  %485 = vmatprep.mubr.bf16.mxu0 0
  %486 = vmatmul.mubr.bf16.gmra.mrb[0].mxu0 %v303
  %v487 = vpop.f32.mrb[0].mxu0
  %v488 = vadd.f32 %v89, %v487
  %v489 = vpop.f32.mrb[0].mxu0
  %v490 = vpop.f32.mrb[0].mxu0
  %v491 = vadd.f32 %v89, %v490
  %v492 = vpop.f32.mrb[0].mxu0
  %493 = vmatprep.mubr.bf16.mxu0 0
  %494 = vmatmul.mubr.bf16.gmra.mrb[0].mxu0 %v306
  %v495 = vpop.f32.mrb[0].mxu0
  %v496 = vadd.f32 %v89, %v495
  %v497 = vpop.f32.mrb[0].mxu0
  %v498 = vpop.f32.mrb[0].mxu0
  %v499 = vadd.f32 %v89, %v498
  %v500 = vpop.f32.mrb[0].mxu0
  %501 = vmatprep.mubr.bf16.mxu0 0
  %502 = vmatmul.mubr.bf16.gmra.mrb[0].mxu0 %v309
  %v503 = vpop.f32.mrb[0].mxu0
  %v504 = vadd.f32 %v89, %v503
  %v505 = vpop.f32.mrb[0].mxu0
  %v506 = vpop.f32.mrb[0].mxu0
  %v507 = vadd.f32 %v89, %v506
  %v508 = vpop.f32.mrb[0].mxu0
  %509 = vmatprep.mubr.bf16.mxu0 0
  %510 = vmatmul.mubr.bf16.gmra.mrb[0].mxu0 %v312
  %v511 = vpop.f32.mrb[0].mxu0
  %v512 = vadd.f32 %v89, %v511
  %v513 = vpop.f32.mrb[0].mxu0
  %v514 = vpop.f32.mrb[0].mxu0
  %v515 = vadd.f32 %v89, %v514
  %v516 = vpop.f32.mrb[0].mxu0
  %517 = vmatprep.mubr.bf16.mxu0 0
  %518 = vmatmul.mubr.bf16.gmra.mrb[0].mxu0 %v315
  %v519 = vpop.f32.mrb[0].mxu0
  %v520 = vadd.f32 %v89, %v519
  %v521 = vpop.f32.mrb[0].mxu0
  %v522 = vpop.f32.mrb[0].mxu0
  %v523 = vadd.f32 %v89, %v522
  %v524 = vpop.f32.mrb[0].mxu0
  %525 = vmatprep.mubr.bf16.mxu0 0
  %526 = vmatmul.mubr.bf16.gmra.mrb[0].mxu0 %v318
  %v527 = vpop.f32.mrb[0].mxu0
  %v528 = vadd.f32 %v89, %v527
  %v529 = vpop.f32.mrb[0].mxu0
  %v530 = vpop.f32.mrb[0].mxu0
  %v531 = vadd.f32 %v89, %v530
  %v532 = vpop.f32.mrb[0].mxu0
  %533 = vmatprep.mubr.bf16.mxu0 0
  %534 = vmatmul.mubr.bf16.gmra.mrb[0].mxu0 %v321
  %v535 = vpop.f32.mrb[0].mxu0
  %v536 = vadd.f32 %v89, %v535
  %v537 = vpop.f32.mrb[0].mxu0
  %v538 = vpop.f32.mrb[0].mxu0
  %v539 = vadd.f32 %v89, %v538
  %v540 = vpop.f32.mrb[0].mxu0
  %541 = vmatprep.mubr.bf16.mxu0 0
  %542 = vmatmul.mubr.bf16.gmra.mrb[0].mxu0 %v324
  %v543 = vpop.f32.mrb[0].mxu0
  %v544 = vadd.f32 %v89, %v543
  %v545 = vpop.f32.mrb[0].mxu0
  %v546 = vpop.f32.mrb[0].mxu0
  %v547 = vadd.f32 %v89, %v546
  %v548 = vpop.f32.mrb[0].mxu0
  %549 = vmatprep.mubr.bf16.mxu0 0
  %550 = vmatmul.mubr.bf16.gmra.mrb[0].mxu0 %v327
  %v551 = vpop.f32.mrb[0].mxu0
  %v552 = vadd.f32 %v89, %v551
  %v553 = vpop.f32.mrb[0].mxu0
  %v554 = vpop.f32.mrb[0].mxu0
  %v555 = vadd.f32 %v89, %v554
  %v556 = vpop.f32.mrb[0].mxu0
  %557 = vmatprep.mubr.bf16.mxu0 0
  %558 = vmatmul.mubr.bf16.gmra.mrb[0].mxu0 %v330
  %v559 = vpop.f32.mrb[0].mxu0
  %v560 = vadd.f32 %v89, %v559
  %v561 = vpop.f32.mrb[0].mxu0
  %v562 = vpop.f32.mrb[0].mxu0
  %v563 = vadd.f32 %v89, %v562
  %v564 = vpop.f32.mrb[0].mxu0
  %565 = vmatprep.mubr.bf16.mxu0 0
  %566 = vmatmul.mubr.bf16.gmra.mrb[0].mxu0 %v333
  %v567 = vpop.f32.mrb[0].mxu0
  %v568 = vadd.f32 %v89, %v567
  %v569 = vpop.f32.mrb[0].mxu0
  %v570 = vpop.f32.mrb[0].mxu0
  %v571 = vadd.f32 %v89, %v570
  %v572 = vpop.f32.mrb[0].mxu0
  %573 = vmatprep.mubr.bf16.mxu0 0
  %574 = vmatmul.mubr.bf16.gmra.mrb[0].mxu0 %v336
  %v575 = vpop.f32.mrb[0].mxu0
  %v576 = vadd.f32 %v89, %v575
  %v577 = vpop.f32.mrb[0].mxu0
  %v578 = vpop.f32.mrb[0].mxu0
  %v579 = vadd.f32 %v89, %v578
  %v580 = vpop.f32.mrb[0].mxu0
  %581 = vmatprep.mubr.bf16.mxu0 0
  %582 = vmatmul.mubr.bf16.gmra.mrb[0].mxu0 %v339
  %v583 = vpop.f32.mrb[0].mxu0
  %v584 = vadd.f32 %v89, %v583
  %v585 = vpop.f32.mrb[0].mxu0
  %v586 = vpop.f32.mrb[0].mxu0
  %v587 = vadd.f32 %v89, %v586
  %v588 = vpop.f32.mrb[0].mxu0
  %589 = vmatprep.mubr.bf16.mxu0 0
  %590 = vmatmul.mubr.bf16.gmra.mrb[0].mxu0 %v342
  %v591 = vpop.f32.mrb[0].mxu0
  %v592 = vadd.f32 %v89, %v591
  %v593 = vpop.f32.mrb[0].mxu0
  %v594 = vpop.f32.mrb[0].mxu0
  %v595 = vadd.f32 %v89, %v594
  %v596 = vpop.f32.mrb[0].mxu0
  %597 = vmatprep.mubr.bf16.mxu0 0
  %598 = vmatmul.mubr.bf16.gmra.mrb[0].mxu0 %v345
  %v599 = vpop.f32.mrb[0].mxu0
  %v600 = vadd.f32 %v89, %v599
  %v601 = vpop.f32.mrb[0].mxu0
  %v602 = vpop.f32.mrb[0].mxu0
  %v603 = vadd.f32 %v89, %v602
  %v604 = vpop.f32.mrb[0].mxu0
  %605 = vmatprep.mubr.bf16.mxu0 0
  %606 = vmatmul.mubr.bf16.gmra.mrb[0].mxu0 %v348
  %v607 = vpop.f32.mrb[0].mxu0
  %v608 = vadd.f32 %v89, %v607
  %v609 = vpop.f32.mrb[0].mxu0
  %v610 = vpop.f32.mrb[0].mxu0
  %v611 = vadd.f32 %v89, %v610
  %v612 = vpop.f32.mrb[0].mxu0
  %613 = vmatprep.mubr.bf16.mxu0 0
  %614 = vmatmul.mubr.bf16.gmra.mrb[0].mxu0 %v351
  %v615 = vpop.f32.mrb[0].mxu0
  %v616 = vadd.f32 %v89, %v615
  %v617 = vpop.f32.mrb[0].mxu0
  %v618 = vpop.f32.mrb[0].mxu0
  %v619 = vadd.f32 %v89, %v618
  %v620 = vpop.f32.mrb[0].mxu0
  %621 = vmatprep.mubr.bf16.mxu0 0
  %622 = vmatmul.mubr.bf16.gmra.mrb[0].mxu0 %v354
  %v623 = vpop.f32.mrb[0].mxu0
  %v624 = vadd.f32 %v89, %v623
  %v625 = vpop.f32.mrb[0].mxu0
  %v626 = vpop.f32.mrb[0].mxu0
  %v627 = vadd.f32 %v89, %v626
  %v628 = vpop.f32.mrb[0].mxu0
  %629 = vmatprep.mubr.bf16.mxu0 0
  %630 = vmatmul.mubr.bf16.gmra.mrb[0].mxu0 %v357
  %v631 = vpop.f32.mrb[0].mxu0
  %v632 = vadd.f32 %v89, %v631
  %v633 = vpop.f32.mrb[0].mxu0
  %v634 = vpop.f32.mrb[0].mxu0
  %v635 = vadd.f32 %v89, %v634
  %v636 = vpop.f32.mrb[0].mxu0
  %637 = vmatprep.mubr.bf16.mxu0 0
  %638 = vmatmul.mubr.bf16.gmra.mrb[0].mxu0 %v360
  %v639 = vpop.f32.mrb[0].mxu0
  %v640 = vadd.f32 %v89, %v639
  %v641 = vpop.f32.mrb[0].mxu0
  %v642 = vpop.f32.mrb[0].mxu0
  %v643 = vadd.f32 %v89, %v642
  %v644 = vpop.f32.mrb[0].mxu0
  %645 = vmatprep.mubr.bf16.mxu0 0
  %646 = vmatmul.mubr.bf16.gmra.mrb[0].mxu0 %v363
  %v647 = vpop.f32.mrb[0].mxu0
  %v648 = vadd.f32 %v89, %v647
  %v649 = vpop.f32.mrb[0].mxu0
  %v650 = vpop.f32.mrb[0].mxu0
  %v651 = vadd.f32 %v89, %v650
  %v652 = vpop.f32.mrb[0].mxu0
  %653 = vdwg.mxu0
  %vm654 = vcmp.gt.f32.partialorder %v400, 0.0
  %vm655 = vcmp.gt.f32.partialorder %v403, 0.0
  %vm656 = vcmp.gt.f32.partialorder %v408, 0.0
  %vm657 = vcmp.gt.f32.partialorder %v411, 0.0
  %vm658 = vcmp.gt.f32.partialorder %v416, 0.0
  %vm659 = vcmp.gt.f32.partialorder %v419, 0.0
  %vm660 = vcmp.gt.f32.partialorder %v424, 0.0
  %vm661 = vcmp.gt.f32.partialorder %v427, 0.0
  %vm662 = vcmp.gt.f32.partialorder %v432, 0.0
  %vm663 = vcmp.gt.f32.partialorder %v435, 0.0
  %vm664 = vcmp.gt.f32.partialorder %v440, 0.0
  %vm665 = vcmp.gt.f32.partialorder %v443, 0.0
  %vm666 = vcmp.gt.f32.partialorder %v448, 0.0
  %vm667 = vcmp.gt.f32.partialorder %v451, 0.0
  %vm668 = vcmp.gt.f32.partialorder %v456, 0.0
  %vm669 = vcmp.gt.f32.partialorder %v459, 0.0
  %vm670 = vcmp.gt.f32.partialorder %v464, 0.0
  %vm671 = vcmp.gt.f32.partialorder %v467, 0.0
  %vm672 = vcmp.gt.f32.partialorder %v472, 0.0
  %vm673 = vcmp.gt.f32.partialorder %v475, 0.0
  %vm674 = vcmp.gt.f32.partialorder %v480, 0.0
  %vm675 = vcmp.gt.f32.partialorder %v483, 0.0
  %vm676 = vcmp.gt.f32.partialorder %v488, 0.0
  %vm677 = vcmp.gt.f32.partialorder %v491, 0.0
  %vm678 = vcmp.gt.f32.partialorder %v496, 0.0
  %vm679 = vcmp.gt.f32.partialorder %v499, 0.0
  %vm680 = vcmp.gt.f32.partialorder %v504, 0.0
  %vm681 = vcmp.gt.f32.partialorder %v507, 0.0
  %vm682 = vcmp.gt.f32.partialorder %v512, 0.0
  %vm683 = vcmp.gt.f32.partialorder %v515, 0.0
  %vm684 = vcmp.gt.f32.partialorder %v520, 0.0
  %vm685 = vcmp.gt.f32.partialorder %v523, 0.0
  %vm686 = vcmp.gt.f32.partialorder %v528, 0.0
  %vm687 = vcmp.gt.f32.partialorder %v531, 0.0
  %vm688 = vcmp.gt.f32.partialorder %v536, 0.0
  %vm689 = vcmp.gt.f32.partialorder %v539, 0.0
  %vm690 = vcmp.gt.f32.partialorder %v544, 0.0
  %vm691 = vcmp.gt.f32.partialorder %v547, 0.0
  %vm692 = vcmp.gt.f32.partialorder %v552, 0.0
  %vm693 = vcmp.gt.f32.partialorder %v555, 0.0
  %vm694 = vcmp.gt.f32.partialorder %v560, 0.0
  %vm695 = vcmp.gt.f32.partialorder %v563, 0.0
  %vm696 = vcmp.gt.f32.partialorder %v568, 0.0
  %vm697 = vcmp.gt.f32.partialorder %v571, 0.0
  %vm698 = vcmp.gt.f32.partialorder %v576, 0.0
  %vm699 = vcmp.gt.f32.partialorder %v579, 0.0
  %vm700 = vcmp.gt.f32.partialorder %v584, 0.0
  %vm701 = vcmp.gt.f32.partialorder %v587, 0.0
  %vm702 = vcmp.gt.f32.partialorder %v592, 0.0
  %vm703 = vcmp.gt.f32.partialorder %v595, 0.0
  %vm704 = vcmp.gt.f32.partialorder %v600, 0.0
  %vm705 = vcmp.gt.f32.partialorder %v603, 0.0
  %vm706 = vcmp.gt.f32.partialorder %v608, 0.0
  %vm707 = vcmp.gt.f32.partialorder %v611, 0.0
  %vm708 = vcmp.gt.f32.partialorder %v616, 0.0
  %vm709 = vcmp.gt.f32.partialorder %v619, 0.0
  %vm710 = vcmp.gt.f32.partialorder %v624, 0.0
  %vm711 = vcmp.gt.f32.partialorder %v627, 0.0
  %vm712 = vcmp.gt.f32.partialorder %v632, 0.0
  %vm713 = vcmp.gt.f32.partialorder %v635, 0.0
  %vm714 = vcmp.gt.f32.partialorder %v640, 0.0
  %vm715 = vcmp.gt.f32.partialorder %v643, 0.0
  %vm716 = vcmp.gt.f32.partialorder %v648, 0.0
  %vm717 = vcmp.gt.f32.partialorder %v651, 0.0
  %v718 = vmul.f32 %v400, 0.2
  %v719 = vmul.f32 %v403, 0.2
  %v720 = vmul.f32 %v408, 0.2
  %v721 = vmul.f32 %v411, 0.2
  %v722 = vmul.f32 %v416, 0.2
  %v723 = vmul.f32 %v419, 0.2
  %v724 = vmul.f32 %v424, 0.2
  %v725 = vmul.f32 %v427, 0.2
  %v726 = vmul.f32 %v432, 0.2
  %v727 = vmul.f32 %v435, 0.2
  %v728 = vmul.f32 %v440, 0.2
  %v729 = vmul.f32 %v443, 0.2
  %v730 = vmul.f32 %v448, 0.2
  %v731 = vmul.f32 %v451, 0.2
  %v732 = vmul.f32 %v456, 0.2
  %v733 = vmul.f32 %v459, 0.2
  %v734 = vmul.f32 %v464, 0.2
  %v735 = vmul.f32 %v467, 0.2
  %v736 = vmul.f32 %v472, 0.2
  %v737 = vmul.f32 %v475, 0.2
  %v738 = vmul.f32 %v480, 0.2
  %v739 = vmul.f32 %v483, 0.2
  %v740 = vmul.f32 %v488, 0.2
  %v741 = vmul.f32 %v491, 0.2
  %v742 = vmul.f32 %v496, 0.2
  %v743 = vmul.f32 %v499, 0.2
  %v744 = vmul.f32 %v504, 0.2
  %v745 = vmul.f32 %v507, 0.2
  %v746 = vmul.f32 %v512, 0.2
  %v747 = vmul.f32 %v515, 0.2
  %v748 = vmul.f32 %v520, 0.2
  %v749 = vmul.f32 %v523, 0.2
  %v750 = vmul.f32 %v528, 0.2
  %v751 = vmul.f32 %v531, 0.2
  %v752 = vmul.f32 %v536, 0.2
  %v753 = vmul.f32 %v539, 0.2
  %v754 = vmul.f32 %v544, 0.2
  %v755 = vmul.f32 %v547, 0.2
  %v756 = vmul.f32 %v552, 0.2
  %v757 = vmul.f32 %v555, 0.2
  %v758 = vmul.f32 %v560, 0.2
  %v759 = vmul.f32 %v563, 0.2
  %v760 = vmul.f32 %v568, 0.2
  %v761 = vmul.f32 %v571, 0.2
  %v762 = vmul.f32 %v576, 0.2
  %v763 = vmul.f32 %v579, 0.2
  %v764 = vmul.f32 %v584, 0.2
  %v765 = vmul.f32 %v587, 0.2
  %v766 = vmul.f32 %v592, 0.2
  %v767 = vmul.f32 %v595, 0.2
  %v768 = vmul.f32 %v600, 0.2
  %v769 = vmul.f32 %v603, 0.2
  %v770 = vmul.f32 %v608, 0.2
  %v771 = vmul.f32 %v611, 0.2
  %v772 = vmul.f32 %v616, 0.2
  %v773 = vmul.f32 %v619, 0.2
  %v774 = vmul.f32 %v624, 0.2
  %v775 = vmul.f32 %v627, 0.2
  %v776 = vmul.f32 %v632, 0.2
  %v777 = vmul.f32 %v635, 0.2
  %v778 = vmul.f32 %v640, 0.2
  %v779 = vmul.f32 %v643, 0.2
  %v780 = vmul.f32 %v648, 0.2
  %v781 = vmul.f32 %v651, 0.2
  %v782 = vsel %vm654, %v400, %v718
  %v783 = vsel %vm655, %v403, %v719
  %v784 = vsel %vm656, %v408, %v720
  %v785 = vsel %vm657, %v411, %v721
  %v786 = vsel %vm658, %v416, %v722
  %v787 = vsel %vm659, %v419, %v723
  %v788 = vsel %vm660, %v424, %v724
  %v789 = vsel %vm661, %v427, %v725
  %v790 = vsel %vm662, %v432, %v726
  %v791 = vsel %vm663, %v435, %v727
  %v792 = vsel %vm664, %v440, %v728
  %v793 = vsel %vm665, %v443, %v729
  %v794 = vsel %vm666, %v448, %v730
  %v795 = vsel %vm667, %v451, %v731
  %v796 = vsel %vm668, %v456, %v732
  %v797 = vsel %vm669, %v459, %v733
  %v798 = vsel %vm670, %v464, %v734
  %v799 = vsel %vm671, %v467, %v735
  %v800 = vsel %vm672, %v472, %v736
  %v801 = vsel %vm673, %v475, %v737
  %v802 = vsel %vm674, %v480, %v738
  %v803 = vsel %vm675, %v483, %v739
  %v804 = vsel %vm676, %v488, %v740
  %v805 = vsel %vm677, %v491, %v741
  %v806 = vsel %vm678, %v496, %v742
  %v807 = vsel %vm679, %v499, %v743
  %v808 = vsel %vm680, %v504, %v744
  %v809 = vsel %vm681, %v507, %v745
  %v810 = vsel %vm682, %v512, %v746
  %v811 = vsel %vm683, %v515, %v747
  %v812 = vsel %vm684, %v520, %v748
  %v813 = vsel %vm685, %v523, %v749
  %v814 = vsel %vm686, %v528, %v750
  %v815 = vsel %vm687, %v531, %v751
  %v816 = vsel %vm688, %v536, %v752
  %v817 = vsel %vm689, %v539, %v753
  %v818 = vsel %vm690, %v544, %v754
  %v819 = vsel %vm691, %v547, %v755
  %v820 = vsel %vm692, %v552, %v756
  %v821 = vsel %vm693, %v555, %v757
  %v822 = vsel %vm694, %v560, %v758
  %v823 = vsel %vm695, %v563, %v759
  %v824 = vsel %vm696, %v568, %v760
  %v825 = vsel %vm697, %v571, %v761
  %v826 = vsel %vm698, %v576, %v762
  %v827 = vsel %vm699, %v579, %v763
  %v828 = vsel %vm700, %v584, %v764
  %v829 = vsel %vm701, %v587, %v765
  %v830 = vsel %vm702, %v592, %v766
  %v831 = vsel %vm703, %v595, %v767
  %v832 = vsel %vm704, %v600, %v768
  %v833 = vsel %vm705, %v603, %v769
  %v834 = vsel %vm706, %v608, %v770
  %v835 = vsel %vm707, %v611, %v771
  %v836 = vsel %vm708, %v616, %v772
  %v837 = vsel %vm709, %v619, %v773
  %v838 = vsel %vm710, %v624, %v774
  %v839 = vsel %vm711, %v627, %v775
  %v840 = vsel %vm712, %v632, %v776
  %v841 = vsel %vm713, %v635, %v777
  %v842 = vsel %vm714, %v640, %v778
  %v843 = vsel %vm715, %v643, %v779
  %v844 = vsel %vm716, %v648, %v780
  %v845 = vsel %vm717, %v651, %v781
  %vm846 = vcmask 523264
  %v847 = vsel %vm846, %v782, 0.0
  %v848 = vsel %vm846, %v783, 0.0
  %v849 = vadd.f32 %v847, %v848
  %v850 = vsel %vm846, %v784, 0.0
  %v851 = vadd.f32 %v849, %v850
  %v852 = vsel %vm846, %v785, 0.0
  %v853 = vadd.f32 %v851, %v852
  %v854 = vsel %vm846, %v786, 0.0
  %v855 = vadd.f32 %v853, %v854
  %v856 = vsel %vm846, %v787, 0.0
  %v857 = vadd.f32 %v855, %v856
  %v858 = vsel %vm846, %v788, 0.0
  %v859 = vadd.f32 %v857, %v858
  %v860 = vsel %vm846, %v789, 0.0
  %v861 = vadd.f32 %v859, %v860
  %v862 = vsel %vm846, %v790, 0.0
  %v863 = vadd.f32 %v861, %v862
  %v864 = vsel %vm846, %v791, 0.0
  %v865 = vadd.f32 %v863, %v864
  %v866 = vsel %vm846, %v792, 0.0
  %v867 = vadd.f32 %v865, %v866
  %v868 = vsel %vm846, %v793, 0.0
  %v869 = vadd.f32 %v867, %v868
  %v870 = vsel %vm846, %v794, 0.0
  %v871 = vadd.f32 %v869, %v870
  %v872 = vsel %vm846, %v795, 0.0
  %v873 = vadd.f32 %v871, %v872
  %v874 = vsel %vm846, %v796, 0.0
  %v875 = vadd.f32 %v873, %v874
  %v876 = vsel %vm846, %v797, 0.0
  %v877 = vadd.f32 %v875, %v876
  %v878 = vsel %vm846, %v798, 0.0
  %v879 = vadd.f32 %v877, %v878
  %v880 = vsel %vm846, %v799, 0.0
  %v881 = vadd.f32 %v879, %v880
  %v882 = vsel %vm846, %v800, 0.0
  %v883 = vadd.f32 %v881, %v882
  %v884 = vsel %vm846, %v801, 0.0
  %v885 = vadd.f32 %v883, %v884
  %v886 = vsel %vm846, %v802, 0.0
  %v887 = vadd.f32 %v885, %v886
  %v888 = vsel %vm846, %v803, 0.0
  %v889 = vadd.f32 %v887, %v888
  %v890 = vsel %vm846, %v804, 0.0
  %v891 = vadd.f32 %v889, %v890
  %v892 = vsel %vm846, %v805, 0.0
  %v893 = vadd.f32 %v891, %v892
  %v894 = vsel %vm846, %v806, 0.0
  %v895 = vadd.f32 %v893, %v894
  %v896 = vsel %vm846, %v807, 0.0
  %v897 = vadd.f32 %v895, %v896
  %v898 = vsel %vm846, %v808, 0.0
  %v899 = vadd.f32 %v897, %v898
  %v900 = vsel %vm846, %v809, 0.0
  %v901 = vadd.f32 %v899, %v900
  %v902 = vsel %vm846, %v810, 0.0
  %v903 = vadd.f32 %v901, %v902
  %v904 = vsel %vm846, %v811, 0.0
  %v905 = vadd.f32 %v903, %v904
  %v906 = vsel %vm846, %v812, 0.0
  %v907 = vadd.f32 %v905, %v906
  %v908 = vsel %vm846, %v813, 0.0
  %v909 = vadd.f32 %v907, %v908
  %v910 = vsel %vm846, %v814, 0.0
  %v911 = vadd.f32 %v909, %v910
  %v912 = vsel %vm846, %v815, 0.0
  %v913 = vadd.f32 %v911, %v912
  %v914 = vsel %vm846, %v816, 0.0
  %v915 = vadd.f32 %v913, %v914
  %v916 = vsel %vm846, %v817, 0.0
  %v917 = vadd.f32 %v915, %v916
  %v918 = vsel %vm846, %v818, 0.0
  %v919 = vadd.f32 %v917, %v918
  %v920 = vsel %vm846, %v819, 0.0
  %v921 = vadd.f32 %v919, %v920
  %v922 = vsel %vm846, %v820, 0.0
  %v923 = vadd.f32 %v921, %v922
  %v924 = vsel %vm846, %v821, 0.0
  %v925 = vadd.f32 %v923, %v924
  %v926 = vsel %vm846, %v822, 0.0
  %v927 = vadd.f32 %v925, %v926
  %v928 = vsel %vm846, %v823, 0.0
  %v929 = vadd.f32 %v927, %v928
  %v930 = vsel %vm846, %v824, 0.0
  %v931 = vadd.f32 %v929, %v930
  %v932 = vsel %vm846, %v825, 0.0
  %v933 = vadd.f32 %v931, %v932
  %v934 = vsel %vm846, %v826, 0.0
  %v935 = vadd.f32 %v933, %v934
  %v936 = vsel %vm846, %v827, 0.0
  %v937 = vadd.f32 %v935, %v936
  %v938 = vsel %vm846, %v828, 0.0
  %v939 = vadd.f32 %v937, %v938
  %v940 = vsel %vm846, %v829, 0.0
  %v941 = vadd.f32 %v939, %v940
  %v942 = vsel %vm846, %v830, 0.0
  %v943 = vadd.f32 %v941, %v942
  %v944 = vsel %vm846, %v831, 0.0
  %v945 = vadd.f32 %v943, %v944
  %v946 = vsel %vm846, %v832, 0.0
  %v947 = vadd.f32 %v945, %v946
  %v948 = vsel %vm846, %v833, 0.0
  %v949 = vadd.f32 %v947, %v948
  %v950 = vsel %vm846, %v834, 0.0
  %v951 = vadd.f32 %v949, %v950
  %v952 = vsel %vm846, %v835, 0.0
  %v953 = vadd.f32 %v951, %v952
  %v954 = vsel %vm846, %v836, 0.0
  %v955 = vadd.f32 %v953, %v954
  %v956 = vsel %vm846, %v837, 0.0
  %v957 = vadd.f32 %v955, %v956
  %v958 = vsel %vm846, %v838, 0.0
  %v959 = vadd.f32 %v957, %v958
  %v960 = vsel %vm846, %v839, 0.0
  %v961 = vadd.f32 %v959, %v960
  %v962 = vsel %vm846, %v840, 0.0
  %v963 = vadd.f32 %v961, %v962
  %v964 = vsel %vm846, %v841, 0.0
  %v965 = vadd.f32 %v963, %v964
  %v966 = vsel %vm846, %v842, 0.0
  %v967 = vadd.f32 %v965, %v966
  %v968 = vsel %vm846, %v843, 0.0
  %v969 = vadd.f32 %v967, %v968
  %v970 = vsel %vm846, %v844, 0.0
  %v971 = vadd.f32 %v969, %v970
  %v972 = vsel %vm846, %v845, 0.0
  %v973 = vadd.f32 %v971, %v972
  %v974 = vrot.slane %v973, 4
  %v975 = vadd.f32 %v973, %v974
  %v976 = vrot.slane %v975, 2
  %v977 = vadd.f32 %v975, %v976
  %v978 = vrot.slane %v977, 1
  %v979 = vadd.f32 %v977, %v978
  %v980 = vmul.f32 %v979, 0.001953125
  %v981 = vmul.f32 %v782, %v782
  %v982 = vmul.f32 %v783, %v783
  %v983 = vmul.f32 %v784, %v784
  %v984 = vmul.f32 %v785, %v785
  %v985 = vmul.f32 %v786, %v786
  %v986 = vmul.f32 %v787, %v787
  %v987 = vmul.f32 %v788, %v788
  %v988 = vmul.f32 %v789, %v789
  %v989 = vmul.f32 %v790, %v790
  %v990 = vmul.f32 %v791, %v791
  %v991 = vmul.f32 %v792, %v792
  %v992 = vmul.f32 %v793, %v793
  %v993 = vmul.f32 %v794, %v794
  %v994 = vmul.f32 %v795, %v795
  %v995 = vmul.f32 %v796, %v796
  %v996 = vmul.f32 %v797, %v797
  %v997 = vmul.f32 %v798, %v798
  %v998 = vmul.f32 %v799, %v799
  %v999 = vmul.f32 %v800, %v800
  %v1000 = vmul.f32 %v801, %v801
  %v1001 = vmul.f32 %v802, %v802
  %v1002 = vmul.f32 %v803, %v803
  %v1003 = vmul.f32 %v804, %v804
  %v1004 = vmul.f32 %v805, %v805
  %v1005 = vmul.f32 %v806, %v806
  %v1006 = vmul.f32 %v807, %v807
  %v1007 = vmul.f32 %v808, %v808
  %v1008 = vmul.f32 %v809, %v809
  %v1009 = vmul.f32 %v810, %v810
  %v1010 = vmul.f32 %v811, %v811
  %v1011 = vmul.f32 %v812, %v812
  %v1012 = vmul.f32 %v813, %v813
  %v1013 = vmul.f32 %v814, %v814
  %v1014 = vmul.f32 %v815, %v815
  %v1015 = vmul.f32 %v816, %v816
  %v1016 = vmul.f32 %v817, %v817
  %v1017 = vmul.f32 %v818, %v818
  %v1018 = vmul.f32 %v819, %v819
  %v1019 = vmul.f32 %v820, %v820
  %v1020 = vmul.f32 %v821, %v821
  %v1021 = vmul.f32 %v822, %v822
  %v1022 = vmul.f32 %v823, %v823
  %v1023 = vmul.f32 %v824, %v824
  %v1024 = vmul.f32 %v825, %v825
  %v1025 = vmul.f32 %v826, %v826
  %v1026 = vmul.f32 %v827, %v827
  %v1027 = vmul.f32 %v828, %v828
  %v1028 = vmul.f32 %v829, %v829
  %v1029 = vmul.f32 %v830, %v830
  %v1030 = vmul.f32 %v831, %v831
  %v1031 = vmul.f32 %v832, %v832
  %v1032 = vmul.f32 %v833, %v833
  %v1033 = vmul.f32 %v834, %v834
  %v1034 = vmul.f32 %v835, %v835
  %v1035 = vmul.f32 %v836, %v836
  %v1036 = vmul.f32 %v837, %v837
  %v1037 = vmul.f32 %v838, %v838
  %v1038 = vmul.f32 %v839, %v839
  %v1039 = vmul.f32 %v840, %v840
  %v1040 = vmul.f32 %v841, %v841
  %v1041 = vmul.f32 %v842, %v842
  %v1042 = vmul.f32 %v843, %v843
  %v1043 = vmul.f32 %v844, %v844
  %v1044 = vmul.f32 %v845, %v845
  %v1045 = vsel %vm846, %v981, 0.0
  %v1046 = vsel %vm846, %v982, 0.0
  %v1047 = vadd.f32 %v1045, %v1046
  %v1048 = vsel %vm846, %v983, 0.0
  %v1049 = vadd.f32 %v1047, %v1048
  %v1050 = vsel %vm846, %v984, 0.0
  %v1051 = vadd.f32 %v1049, %v1050
  %v1052 = vsel %vm846, %v985, 0.0
  %v1053 = vadd.f32 %v1051, %v1052
  %v1054 = vsel %vm846, %v986, 0.0
  %v1055 = vadd.f32 %v1053, %v1054
  %v1056 = vsel %vm846, %v987, 0.0
  %v1057 = vadd.f32 %v1055, %v1056
  %v1058 = vsel %vm846, %v988, 0.0
  %v1059 = vadd.f32 %v1057, %v1058
  %v1060 = vsel %vm846, %v989, 0.0
  %v1061 = vadd.f32 %v1059, %v1060
  %v1062 = vsel %vm846, %v990, 0.0
  %v1063 = vadd.f32 %v1061, %v1062
  %v1064 = vsel %vm846, %v991, 0.0
  %v1065 = vadd.f32 %v1063, %v1064
  %v1066 = vsel %vm846, %v992, 0.0
  %v1067 = vadd.f32 %v1065, %v1066
  %v1068 = vsel %vm846, %v993, 0.0
  %v1069 = vadd.f32 %v1067, %v1068
  %v1070 = vsel %vm846, %v994, 0.0
  %v1071 = vadd.f32 %v1069, %v1070
  %v1072 = vsel %vm846, %v995, 0.0
  %v1073 = vadd.f32 %v1071, %v1072
  %v1074 = vsel %vm846, %v996, 0.0
  %v1075 = vadd.f32 %v1073, %v1074
  %v1076 = vsel %vm846, %v997, 0.0
  %v1077 = vadd.f32 %v1075, %v1076
  %v1078 = vsel %vm846, %v998, 0.0
  %v1079 = vadd.f32 %v1077, %v1078
  %v1080 = vsel %vm846, %v999, 0.0
  %v1081 = vadd.f32 %v1079, %v1080
  %v1082 = vsel %vm846, %v1000, 0.0
  %v1083 = vadd.f32 %v1081, %v1082
  %v1084 = vsel %vm846, %v1001, 0.0
  %v1085 = vadd.f32 %v1083, %v1084
  %v1086 = vsel %vm846, %v1002, 0.0
  %v1087 = vadd.f32 %v1085, %v1086
  %v1088 = vsel %vm846, %v1003, 0.0
  %v1089 = vadd.f32 %v1087, %v1088
  %v1090 = vsel %vm846, %v1004, 0.0
  %v1091 = vadd.f32 %v1089, %v1090
  %v1092 = vsel %vm846, %v1005, 0.0
  %v1093 = vadd.f32 %v1091, %v1092
  %v1094 = vsel %vm846, %v1006, 0.0
  %v1095 = vadd.f32 %v1093, %v1094
  %v1096 = vsel %vm846, %v1007, 0.0
  %v1097 = vadd.f32 %v1095, %v1096
  %v1098 = vsel %vm846, %v1008, 0.0
  %v1099 = vadd.f32 %v1097, %v1098
  %v1100 = vsel %vm846, %v1009, 0.0
  %v1101 = vadd.f32 %v1099, %v1100
  %v1102 = vsel %vm846, %v1010, 0.0
  %v1103 = vadd.f32 %v1101, %v1102
  %v1104 = vsel %vm846, %v1011, 0.0
  %v1105 = vadd.f32 %v1103, %v1104
  %v1106 = vsel %vm846, %v1012, 0.0
  %v1107 = vadd.f32 %v1105, %v1106
  %v1108 = vsel %vm846, %v1013, 0.0
  %v1109 = vadd.f32 %v1107, %v1108
  %v1110 = vsel %vm846, %v1014, 0.0
  %v1111 = vadd.f32 %v1109, %v1110
  %v1112 = vsel %vm846, %v1015, 0.0
  %v1113 = vadd.f32 %v1111, %v1112
  %v1114 = vsel %vm846, %v1016, 0.0
  %v1115 = vadd.f32 %v1113, %v1114
  %v1116 = vsel %vm846, %v1017, 0.0
  %v1117 = vadd.f32 %v1115, %v1116
  %v1118 = vsel %vm846, %v1018, 0.0
  %v1119 = vadd.f32 %v1117, %v1118
  %v1120 = vsel %vm846, %v1019, 0.0
  %v1121 = vadd.f32 %v1119, %v1120
  %v1122 = vsel %vm846, %v1020, 0.0
  %v1123 = vadd.f32 %v1121, %v1122
  %v1124 = vsel %vm846, %v1021, 0.0
  %v1125 = vadd.f32 %v1123, %v1124
  %v1126 = vsel %vm846, %v1022, 0.0
  %v1127 = vadd.f32 %v1125, %v1126
  %v1128 = vsel %vm846, %v1023, 0.0
  %v1129 = vadd.f32 %v1127, %v1128
  %v1130 = vsel %vm846, %v1024, 0.0
  %v1131 = vadd.f32 %v1129, %v1130
  %v1132 = vsel %vm846, %v1025, 0.0
  %v1133 = vadd.f32 %v1131, %v1132
  %v1134 = vsel %vm846, %v1026, 0.0
  %v1135 = vadd.f32 %v1133, %v1134
  %v1136 = vsel %vm846, %v1027, 0.0
  %v1137 = vadd.f32 %v1135, %v1136
  %v1138 = vsel %vm846, %v1028, 0.0
  %v1139 = vadd.f32 %v1137, %v1138
  %v1140 = vsel %vm846, %v1029, 0.0
  %v1141 = vadd.f32 %v1139, %v1140
  %v1142 = vsel %vm846, %v1030, 0.0
  %v1143 = vadd.f32 %v1141, %v1142
  %v1144 = vsel %vm846, %v1031, 0.0
  %v1145 = vadd.f32 %v1143, %v1144
  %v1146 = vsel %vm846, %v1032, 0.0
  %v1147 = vadd.f32 %v1145, %v1146
  %v1148 = vsel %vm846, %v1033, 0.0
  %v1149 = vadd.f32 %v1147, %v1148
  %v1150 = vsel %vm846, %v1034, 0.0
  %v1151 = vadd.f32 %v1149, %v1150
  %v1152 = vsel %vm846, %v1035, 0.0
  %v1153 = vadd.f32 %v1151, %v1152
  %v1154 = vsel %vm846, %v1036, 0.0
  %v1155 = vadd.f32 %v1153, %v1154
  %v1156 = vsel %vm846, %v1037, 0.0
  %v1157 = vadd.f32 %v1155, %v1156
  %v1158 = vsel %vm846, %v1038, 0.0
  %v1159 = vadd.f32 %v1157, %v1158
  %v1160 = vsel %vm846, %v1039, 0.0
  %v1161 = vadd.f32 %v1159, %v1160
  %v1162 = vsel %vm846, %v1040, 0.0
  %v1163 = vadd.f32 %v1161, %v1162
  %v1164 = vsel %vm846, %v1041, 0.0
  %v1165 = vadd.f32 %v1163, %v1164
  %v1166 = vsel %vm846, %v1042, 0.0
  %v1167 = vadd.f32 %v1165, %v1166
  %v1168 = vsel %vm846, %v1043, 0.0
  %v1169 = vadd.f32 %v1167, %v1168
  %v1170 = vsel %vm846, %v1044, 0.0
  %v1171 = vadd.f32 %v1169, %v1170
  %v1172 = vrot.slane %v1171, 4
  %v1173 = vadd.f32 %v1171, %v1172
  %v1174 = vrot.slane %v1173, 2
  %v1175 = vadd.f32 %v1173, %v1174
  %v1176 = vrot.slane %v1175, 1
  %v1177 = vadd.f32 %v1175, %v1176
  %v1178 = vmul.f32 %v1177, 0.001953125
  %v1179 = vmul.f32 %v980, %v980
  %v1180 = vsub.f32 %v1178, %v1179
  %v1181 = vmax.f32 %v1180, 0.0
  %v1182 = vadd.f32 %v1181, 1e-05
  %v1183 = vrsqrt.pop %v1182
  %v1184 = vmul.f32 %v85, %v1183
  %v1185 = vmul.f32 %v980, %v1184
  %v1187 = vrot.slane %v1185, 7
  %v1189 = vsub.f32 %v85, %v1187
  %v1190 = vlaneseq
  %v1191 = vshrl.u32 %v1190, 7
  %v1192 = vsub.s32 1, %v1191
  %v1193 = vrot.slane %v1184, %v1192
  %v1194 = vmul.f32 %v782, %v1193
  %v1195 = vmul.f32 %v783, %v1193
  %v1196 = vmul.f32 %v784, %v1193
  %v1197 = vmul.f32 %v785, %v1193
  %v1198 = vmul.f32 %v786, %v1193
  %v1199 = vmul.f32 %v787, %v1193
  %v1200 = vmul.f32 %v788, %v1193
  %v1201 = vmul.f32 %v789, %v1193
  %v1202 = vmul.f32 %v790, %v1193
  %v1203 = vmul.f32 %v791, %v1193
  %v1204 = vmul.f32 %v792, %v1193
  %v1205 = vmul.f32 %v793, %v1193
  %v1206 = vmul.f32 %v794, %v1193
  %v1207 = vmul.f32 %v795, %v1193
  %v1208 = vmul.f32 %v796, %v1193
  %v1209 = vmul.f32 %v797, %v1193
  %v1210 = vmul.f32 %v798, %v1193
  %v1211 = vmul.f32 %v799, %v1193
  %v1212 = vmul.f32 %v800, %v1193
  %v1213 = vmul.f32 %v801, %v1193
  %v1214 = vmul.f32 %v802, %v1193
  %v1215 = vmul.f32 %v803, %v1193
  %v1216 = vmul.f32 %v804, %v1193
  %v1217 = vmul.f32 %v805, %v1193
  %v1218 = vmul.f32 %v806, %v1193
  %v1219 = vmul.f32 %v807, %v1193
  %v1220 = vmul.f32 %v808, %v1193
  %v1221 = vmul.f32 %v809, %v1193
  %v1222 = vmul.f32 %v810, %v1193
  %v1223 = vmul.f32 %v811, %v1193
  %v1224 = vmul.f32 %v812, %v1193
  %v1225 = vmul.f32 %v813, %v1193
  %v1226 = vmul.f32 %v814, %v1193
  %v1227 = vmul.f32 %v815, %v1193
  %v1228 = vmul.f32 %v816, %v1193
  %v1229 = vmul.f32 %v817, %v1193
  %v1230 = vmul.f32 %v818, %v1193
  %v1231 = vmul.f32 %v819, %v1193
  %v1232 = vmul.f32 %v820, %v1193
  %v1233 = vmul.f32 %v821, %v1193
  %v1234 = vmul.f32 %v822, %v1193
  %v1235 = vmul.f32 %v823, %v1193
  %v1236 = vmul.f32 %v824, %v1193
  %v1237 = vmul.f32 %v825, %v1193
  %v1238 = vmul.f32 %v826, %v1193
  %v1239 = vmul.f32 %v827, %v1193
  %v1240 = vmul.f32 %v828, %v1193
  %v1241 = vmul.f32 %v829, %v1193
  %v1242 = vmul.f32 %v830, %v1193
  %v1243 = vmul.f32 %v831, %v1193
  %v1244 = vmul.f32 %v832, %v1193
  %v1245 = vmul.f32 %v833, %v1193
  %v1246 = vmul.f32 %v834, %v1193
  %v1247 = vmul.f32 %v835, %v1193
  %v1248 = vmul.f32 %v836, %v1193
  %v1249 = vmul.f32 %v837, %v1193
  %v1250 = vmul.f32 %v838, %v1193
  %v1251 = vmul.f32 %v839, %v1193
  %v1252 = vmul.f32 %v840, %v1193
  %v1253 = vmul.f32 %v841, %v1193
  %v1254 = vmul.f32 %v842, %v1193
  %v1255 = vmul.f32 %v843, %v1193
  %v1256 = vmul.f32 %v844, %v1193
  %v1257 = vmul.f32 %v845, %v1193
  %v1258 = vlaneseq
  %v1259 = vshrl.u32 %v1258, 7
  %v1260 = vsub.s32 2, %v1259
  %v1261 = vrot.slane %v1189, %v1260
  %v1262 = vadd.f32 %v1194, %v1261
  %v1263 = vadd.f32 %v1195, %v1261
  %v1264 = vadd.f32 %v1196, %v1261
  %v1265 = vadd.f32 %v1197, %v1261
  %v1266 = vadd.f32 %v1198, %v1261
  %v1267 = vadd.f32 %v1199, %v1261
  %v1268 = vadd.f32 %v1200, %v1261
  %v1269 = vadd.f32 %v1201, %v1261
  %v1270 = vadd.f32 %v1202, %v1261
  %v1271 = vadd.f32 %v1203, %v1261
  %v1272 = vadd.f32 %v1204, %v1261
  %v1273 = vadd.f32 %v1205, %v1261
  %v1274 = vadd.f32 %v1206, %v1261
  %v1275 = vadd.f32 %v1207, %v1261
  %v1276 = vadd.f32 %v1208, %v1261
  %v1277 = vadd.f32 %v1209, %v1261
  %v1278 = vadd.f32 %v1210, %v1261
  %v1279 = vadd.f32 %v1211, %v1261
  %v1280 = vadd.f32 %v1212, %v1261
  %v1281 = vadd.f32 %v1213, %v1261
  %v1282 = vadd.f32 %v1214, %v1261
  %v1283 = vadd.f32 %v1215, %v1261
  %v1284 = vadd.f32 %v1216, %v1261
  %v1285 = vadd.f32 %v1217, %v1261
  %v1286 = vadd.f32 %v1218, %v1261
  %v1287 = vadd.f32 %v1219, %v1261
  %v1288 = vadd.f32 %v1220, %v1261
  %v1289 = vadd.f32 %v1221, %v1261
  %v1290 = vadd.f32 %v1222, %v1261
  %v1291 = vadd.f32 %v1223, %v1261
  %v1292 = vadd.f32 %v1224, %v1261
  %v1293 = vadd.f32 %v1225, %v1261
  %v1294 = vadd.f32 %v1226, %v1261
  %v1295 = vadd.f32 %v1227, %v1261
  %v1296 = vadd.f32 %v1228, %v1261
  %v1297 = vadd.f32 %v1229, %v1261
  %v1298 = vadd.f32 %v1230, %v1261
  %v1299 = vadd.f32 %v1231, %v1261
  %v1300 = vadd.f32 %v1232, %v1261
  %v1301 = vadd.f32 %v1233, %v1261
  %v1302 = vadd.f32 %v1234, %v1261
  %v1303 = vadd.f32 %v1235, %v1261
  %v1304 = vadd.f32 %v1236, %v1261
  %v1305 = vadd.f32 %v1237, %v1261
  %v1306 = vadd.f32 %v1238, %v1261
  %v1307 = vadd.f32 %v1239, %v1261
  %v1308 = vadd.f32 %v1240, %v1261
  %v1309 = vadd.f32 %v1241, %v1261
  %v1310 = vadd.f32 %v1242, %v1261
  %v1311 = vadd.f32 %v1243, %v1261
  %v1312 = vadd.f32 %v1244, %v1261
  %v1313 = vadd.f32 %v1245, %v1261
  %v1314 = vadd.f32 %v1246, %v1261
  %v1315 = vadd.f32 %v1247, %v1261
  %v1316 = vadd.f32 %v1248, %v1261
  %v1317 = vadd.f32 %v1249, %v1261
  %v1318 = vadd.f32 %v1250, %v1261
  %v1319 = vadd.f32 %v1251, %v1261
  %v1320 = vadd.f32 %v1252, %v1261
  %v1321 = vadd.f32 %v1253, %v1261
  %v1322 = vadd.f32 %v1254, %v1261
  %v1323 = vadd.f32 %v1255, %v1261
  %v1324 = vadd.f32 %v1256, %v1261
  %v1325 = vadd.f32 %v1257, %v1261
  %v1326 = vpack.c.bf16 %v1263, %v1262
  %v1327 = vpack.c.bf16 %v1265, %v1264
  %v1328 = vpack.c.bf16 %v1267, %v1266
  %v1329 = vpack.c.bf16 %v1269, %v1268
  %v1330 = vpack.c.bf16 %v1271, %v1270
  %v1331 = vpack.c.bf16 %v1273, %v1272
  %v1332 = vpack.c.bf16 %v1275, %v1274
  %v1333 = vpack.c.bf16 %v1277, %v1276
  %v1334 = vpack.c.bf16 %v1279, %v1278
  %v1335 = vpack.c.bf16 %v1281, %v1280
  %v1336 = vpack.c.bf16 %v1283, %v1282
  %v1337 = vpack.c.bf16 %v1285, %v1284
  %v1338 = vpack.c.bf16 %v1287, %v1286
  %v1339 = vpack.c.bf16 %v1289, %v1288
  %v1340 = vpack.c.bf16 %v1291, %v1290
  %v1341 = vpack.c.bf16 %v1293, %v1292
  %v1342 = vpack.c.bf16 %v1295, %v1294
  %v1343 = vpack.c.bf16 %v1297, %v1296
  %v1344 = vpack.c.bf16 %v1299, %v1298
  %v1345 = vpack.c.bf16 %v1301, %v1300
  %v1346 = vpack.c.bf16 %v1303, %v1302
  %v1347 = vpack.c.bf16 %v1305, %v1304
  %v1348 = vpack.c.bf16 %v1307, %v1306
  %v1349 = vpack.c.bf16 %v1309, %v1308
  %v1350 = vpack.c.bf16 %v1311, %v1310
  %v1351 = vpack.c.bf16 %v1313, %v1312
  %v1352 = vpack.c.bf16 %v1315, %v1314
  %v1353 = vpack.c.bf16 %v1317, %v1316
  %v1354 = vpack.c.bf16 %v1319, %v1318
  %v1355 = vpack.c.bf16 %v1321, %v1320
  %v1356 = vpack.c.bf16 %v1323, %v1322
  %v1357 = vpack.c.bf16 %v1325, %v1324
  %v1390 = vunpack.c.l.b16 %v1326
  %v1391 = vunpack.c.h.b16 %v1326
  %v1392 = vunpack.c.l.b16 %v1327
  %v1393 = vunpack.c.h.b16 %v1327
  %v1394 = vunpack.c.l.b16 %v1328
  %v1395 = vunpack.c.h.b16 %v1328
  %v1396 = vunpack.c.l.b16 %v1329
  %v1397 = vunpack.c.h.b16 %v1329
  %v1398 = vunpack.c.l.b16 %v1330
  %v1399 = vunpack.c.h.b16 %v1330
  %v1400 = vunpack.c.l.b16 %v1331
  %v1401 = vunpack.c.h.b16 %v1331
  %v1402 = vunpack.c.l.b16 %v1332
  %v1403 = vunpack.c.h.b16 %v1332
  %v1404 = vunpack.c.l.b16 %v1333
  %v1405 = vunpack.c.h.b16 %v1333
  %v1406 = vunpack.c.l.b16 %v1334
  %v1407 = vunpack.c.h.b16 %v1334
  %v1408 = vunpack.c.l.b16 %v1335
  %v1409 = vunpack.c.h.b16 %v1335
  %v1410 = vunpack.c.l.b16 %v1336
  %v1411 = vunpack.c.h.b16 %v1336
  %v1412 = vunpack.c.l.b16 %v1337
  %v1413 = vunpack.c.h.b16 %v1337
  %v1414 = vunpack.c.l.b16 %v1338
  %v1415 = vunpack.c.h.b16 %v1338
  %v1416 = vunpack.c.l.b16 %v1339
  %v1417 = vunpack.c.h.b16 %v1339
  %v1418 = vunpack.c.l.b16 %v1340
  %v1419 = vunpack.c.h.b16 %v1340
  %v1420 = vunpack.c.l.b16 %v1341
  %v1421 = vunpack.c.h.b16 %v1341
  %v1422 = vunpack.c.l.b16 %v1342
  %v1423 = vunpack.c.h.b16 %v1342
  %v1424 = vunpack.c.l.b16 %v1343
  %v1425 = vunpack.c.h.b16 %v1343
  %v1426 = vunpack.c.l.b16 %v1344
  %v1427 = vunpack.c.h.b16 %v1344
  %v1428 = vunpack.c.l.b16 %v1345
  %v1429 = vunpack.c.h.b16 %v1345
  %v1430 = vunpack.c.l.b16 %v1346
  %v1431 = vunpack.c.h.b16 %v1346
  %v1432 = vunpack.c.l.b16 %v1347
  %v1433 = vunpack.c.h.b16 %v1347
  %v1434 = vunpack.c.l.b16 %v1348
  %v1435 = vunpack.c.h.b16 %v1348
  %v1436 = vunpack.c.l.b16 %v1349
  %v1437 = vunpack.c.h.b16 %v1349
  %v1438 = vunpack.c.l.b16 %v1350
  %v1439 = vunpack.c.h.b16 %v1350
  %v1440 = vunpack.c.l.b16 %v1351
  %v1441 = vunpack.c.h.b16 %v1351
  %v1442 = vunpack.c.l.b16 %v1352
  %v1443 = vunpack.c.h.b16 %v1352
  %v1444 = vunpack.c.l.b16 %v1353
  %v1445 = vunpack.c.h.b16 %v1353
  %v1446 = vunpack.c.l.b16 %v1354
  %v1447 = vunpack.c.h.b16 %v1354
  %v1448 = vunpack.c.l.b16 %v1355
  %v1449 = vunpack.c.h.b16 %v1355
  %v1450 = vunpack.c.l.b16 %v1356
  %v1451 = vunpack.c.h.b16 %v1356
  %v1452 = vunpack.c.l.b16 %v1357
  %v1453 = vunpack.c.h.b16 %v1357
  %v1454 = vpack.c.b16 %v1390, %v1390
  %v1455 = vpack.c.b16 %v1391, %v1391
  %v1456 = vpack.c.b16 %v1392, %v1392
  %v1457 = vpack.c.b16 %v1393, %v1393
  %v1458 = vpack.c.b16 %v1394, %v1394
  %v1459 = vpack.c.b16 %v1395, %v1395
  %v1460 = vpack.c.b16 %v1396, %v1396
  %v1461 = vpack.c.b16 %v1397, %v1397
  %v1462 = vpack.c.b16 %v1398, %v1398
  %v1463 = vpack.c.b16 %v1399, %v1399
  %v1464 = vpack.c.b16 %v1400, %v1400
  %v1465 = vpack.c.b16 %v1401, %v1401
  %v1466 = vpack.c.b16 %v1402, %v1402
  %v1467 = vpack.c.b16 %v1403, %v1403
  %v1468 = vpack.c.b16 %v1404, %v1404
  %v1469 = vpack.c.b16 %v1405, %v1405
  %v1470 = vpack.c.b16 %v1406, %v1406
  %v1471 = vpack.c.b16 %v1407, %v1407
  %v1472 = vpack.c.b16 %v1408, %v1408
  %v1473 = vpack.c.b16 %v1409, %v1409
  %v1474 = vpack.c.b16 %v1410, %v1410
  %v1475 = vpack.c.b16 %v1411, %v1411
  %v1476 = vpack.c.b16 %v1412, %v1412
  %v1477 = vpack.c.b16 %v1413, %v1413
  %v1478 = vpack.c.b16 %v1414, %v1414
  %v1479 = vpack.c.b16 %v1415, %v1415
  %v1480 = vpack.c.b16 %v1416, %v1416
  %v1481 = vpack.c.b16 %v1417, %v1417
  %v1482 = vpack.c.b16 %v1418, %v1418
  %v1483 = vpack.c.b16 %v1419, %v1419
  %v1484 = vpack.c.b16 %v1420, %v1420
  %v1485 = vpack.c.b16 %v1421, %v1421
  %v1486 = vpack.c.b16 %v1422, %v1422
  %v1487 = vpack.c.b16 %v1423, %v1423
  %v1488 = vpack.c.b16 %v1424, %v1424
  %v1489 = vpack.c.b16 %v1425, %v1425
  %v1490 = vpack.c.b16 %v1426, %v1426
  %v1491 = vpack.c.b16 %v1427, %v1427
  %v1492 = vpack.c.b16 %v1428, %v1428
  %v1493 = vpack.c.b16 %v1429, %v1429
  %v1494 = vpack.c.b16 %v1430, %v1430
  %v1495 = vpack.c.b16 %v1431, %v1431
  %v1496 = vpack.c.b16 %v1432, %v1432
  %v1497 = vpack.c.b16 %v1433, %v1433
  %v1498 = vpack.c.b16 %v1434, %v1434
  %v1499 = vpack.c.b16 %v1435, %v1435
  %v1500 = vpack.c.b16 %v1436, %v1436
  %v1501 = vpack.c.b16 %v1437, %v1437
  %v1502 = vpack.c.b16 %v1438, %v1438
  %v1503 = vpack.c.b16 %v1439, %v1439
  %v1504 = vpack.c.b16 %v1440, %v1440
  %v1505 = vpack.c.b16 %v1441, %v1441
  %v1506 = vpack.c.b16 %v1442, %v1442
  %v1507 = vpack.c.b16 %v1443, %v1443
  %v1508 = vpack.c.b16 %v1444, %v1444
  %v1509 = vpack.c.b16 %v1445, %v1445
  %v1510 = vpack.c.b16 %v1446, %v1446
  %v1511 = vpack.c.b16 %v1447, %v1447
  %v1512 = vpack.c.b16 %v1448, %v1448
  %v1513 = vpack.c.b16 %v1449, %v1449
  %v1514 = vpack.c.b16 %v1450, %v1450
  %v1515 = vpack.c.b16 %v1451, %v1451
  %v1516 = vpack.c.b16 %v1452, %v1452
  %v1517 = vpack.c.b16 %v1453, %v1453
  %vm1582 = vcmask 519168
  %1583 = vst.msk [vmem:[%s3] sm:$0xf] %vm1582, %v1454
  %1584 = vst.msk [vmem:[%s3 + $0x4] sm:$0xf] %vm1582, %v1455
  %1585 = vst.msk [vmem:[%s3 + $0x8] sm:$0xf] %vm1582, %v1456
  %1586 = vst.msk [vmem:[%s3 + $0xc] sm:$0xf] %vm1582, %v1457
  %1587 = vst.msk [vmem:[%s3 + $0x10] sm:$0xf] %vm1582, %v1458
  %1588 = vst.msk [vmem:[%s3 + $0x14] sm:$0xf] %vm1582, %v1459
  %1589 = vst.msk [vmem:[%s3 + $0x18] sm:$0xf] %vm1582, %v1460
  %1590 = vst.msk [vmem:[%s3 + $0x1c] sm:$0xf] %vm1582, %v1461
  %1591 = vst.msk [vmem:[%s3 + $0x20] sm:$0xf] %vm1582, %v1462
  %1592 = vst.msk [vmem:[%s3 + $0x24] sm:$0xf] %vm1582, %v1463
  %1593 = vst.msk [vmem:[%s3 + $0x28] sm:$0xf] %vm1582, %v1464
  %1594 = vst.msk [vmem:[%s3 + $0x2c] sm:$0xf] %vm1582, %v1465
  %1595 = vst.msk [vmem:[%s3 + $0x30] sm:$0xf] %vm1582, %v1466
  %1596 = vst.msk [vmem:[%s3 + $0x34] sm:$0xf] %vm1582, %v1467
  %1597 = vst.msk [vmem:[%s3 + $0x38] sm:$0xf] %vm1582, %v1468
  %1598 = vst.msk [vmem:[%s3 + $0x3c] sm:$0xf] %vm1582, %v1469
  %1599 = vst.msk [vmem:[%s3 + $0x40] sm:$0xf] %vm1582, %v1470
  %1600 = vst.msk [vmem:[%s3 + $0x44] sm:$0xf] %vm1582, %v1471
  %1601 = vst.msk [vmem:[%s3 + $0x48] sm:$0xf] %vm1582, %v1472
  %1602 = vst.msk [vmem:[%s3 + $0x4c] sm:$0xf] %vm1582, %v1473
  %1603 = vst.msk [vmem:[%s3 + $0x50] sm:$0xf] %vm1582, %v1474
  %1604 = vst.msk [vmem:[%s3 + $0x54] sm:$0xf] %vm1582, %v1475
  %1605 = vst.msk [vmem:[%s3 + $0x58] sm:$0xf] %vm1582, %v1476
  %1606 = vst.msk [vmem:[%s3 + $0x5c] sm:$0xf] %vm1582, %v1477
  %1607 = vst.msk [vmem:[%s3 + $0x60] sm:$0xf] %vm1582, %v1478
  %1608 = vst.msk [vmem:[%s3 + $0x64] sm:$0xf] %vm1582, %v1479
  %1609 = vst.msk [vmem:[%s3 + $0x68] sm:$0xf] %vm1582, %v1480
  %1610 = vst.msk [vmem:[%s3 + $0x6c] sm:$0xf] %vm1582, %v1481
  %1611 = vst.msk [vmem:[%s3 + $0x70] sm:$0xf] %vm1582, %v1482
  %1612 = vst.msk [vmem:[%s3 + $0x74] sm:$0xf] %vm1582, %v1483
  %1613 = vst.msk [vmem:[%s3 + $0x78] sm:$0xf] %vm1582, %v1484
  %1614 = vst.msk [vmem:[%s3 + $0x7c] sm:$0xf] %vm1582, %v1485
  %1615 = vst.msk [vmem:[%s3 + $0x80] sm:$0xf] %vm1582, %v1486
  %1616 = vst.msk [vmem:[%s3 + $0x84] sm:$0xf] %vm1582, %v1487
  %1617 = vst.msk [vmem:[%s3 + $0x88] sm:$0xf] %vm1582, %v1488
  %1618 = vst.msk [vmem:[%s3 + $0x8c] sm:$0xf] %vm1582, %v1489
  %1619 = vst.msk [vmem:[%s3 + $0x90] sm:$0xf] %vm1582, %v1490
  %1620 = vst.msk [vmem:[%s3 + $0x94] sm:$0xf] %vm1582, %v1491
  %1621 = vst.msk [vmem:[%s3 + $0x98] sm:$0xf] %vm1582, %v1492
  %1622 = vst.msk [vmem:[%s3 + $0x9c] sm:$0xf] %vm1582, %v1493
  %1623 = vst.msk [vmem:[%s3 + $0xa0] sm:$0xf] %vm1582, %v1494
  %1624 = vst.msk [vmem:[%s3 + $0xa4] sm:$0xf] %vm1582, %v1495
  %1625 = vst.msk [vmem:[%s3 + $0xa8] sm:$0xf] %vm1582, %v1496
  %1626 = vst.msk [vmem:[%s3 + $0xac] sm:$0xf] %vm1582, %v1497
  %1627 = vst.msk [vmem:[%s3 + $0xb0] sm:$0xf] %vm1582, %v1498
  %1628 = vst.msk [vmem:[%s3 + $0xb4] sm:$0xf] %vm1582, %v1499
  %1629 = vst.msk [vmem:[%s3 + $0xb8] sm:$0xf] %vm1582, %v1500
  %1630 = vst.msk [vmem:[%s3 + $0xbc] sm:$0xf] %vm1582, %v1501
  %1631 = vst.msk [vmem:[%s3 + $0xc0] sm:$0xf] %vm1582, %v1502
  %1632 = vst.msk [vmem:[%s3 + $0xc4] sm:$0xf] %vm1582, %v1503
  %1633 = vst.msk [vmem:[%s3 + $0xc8] sm:$0xf] %vm1582, %v1504
  %1634 = vst.msk [vmem:[%s3 + $0xcc] sm:$0xf] %vm1582, %v1505
  %1635 = vst.msk [vmem:[%s3 + $0xd0] sm:$0xf] %vm1582, %v1506
  %1636 = vst.msk [vmem:[%s3 + $0xd4] sm:$0xf] %vm1582, %v1507
  %1637 = vst.msk [vmem:[%s3 + $0xd8] sm:$0xf] %vm1582, %v1508
  %1638 = vst.msk [vmem:[%s3 + $0xdc] sm:$0xf] %vm1582, %v1509
  %1639 = vst.msk [vmem:[%s3 + $0xe0] sm:$0xf] %vm1582, %v1510
  %1640 = vst.msk [vmem:[%s3 + $0xe4] sm:$0xf] %vm1582, %v1511
  %1641 = vst.msk [vmem:[%s3 + $0xe8] sm:$0xf] %vm1582, %v1512
  %1642 = vst.msk [vmem:[%s3 + $0xec] sm:$0xf] %vm1582, %v1513
  %1643 = vst.msk [vmem:[%s3 + $0xf0] sm:$0xf] %vm1582, %v1514
  %1644 = vst.msk [vmem:[%s3 + $0xf4] sm:$0xf] %vm1582, %v1515
  %1645 = vst.msk [vmem:[%s3 + $0xf8] sm:$0xf] %vm1582, %v1516
  %1646 = vst.msk [vmem:[%s3 + $0xfc] sm:$0xf] %vm1582, %v1517
  // Predicated region
  $region14: #{tpu_custom_call.1} parent=0 // pred_check
    _
  $region15: #{tpu_custom_call.1} parent=0 // pred_check_branch
    %1648 = sbr.rel (0) target = $region17
  $region16: #{tpu_custom_call.1} parent=0 // pred_region
    _
  $region17: #{tpu_custom_call.1} parent=0 // pred_fallthru
    _
  // Predicated region
  $region18: #{tpu_custom_call.1} parent=0 // pred_check
    _
  $region19: #{tpu_custom_call.1} parent=0 // pred_check_branch
    %1650 = sbr.rel (0) target = $region21
  $region20: #{tpu_custom_call.1} parent=0 // pred_region
    _
  $region21: #{tpu_custom_call.1} parent=0 // pred_fallthru
    _

</llo_original>
